<compile_context>
chip_gen: v7x
topology: tpu7x:2x2x1
jax: 0.10.0
libtpu: 0.0.40
codegen_flags: <defaults>
</compile_context>

<pallas_src>
import functools

import jax
import jax.numpy as jnp
from jax.experimental import pallas as pl
from jax.experimental.pallas import tpu as pltpu

LN_EPS = 1e-5   # torch.nn.LayerNorm default
LANE = 128
SUBLANE = 8


def _round_up(n, m):
    return ((n + m - 1) // m) * m


def _vmem_cap_bytes():
    """Physical per-core VMEM minus ~8 MiB headroom (generation-aware)."""
    try:
        phys = int(getattr(pltpu.get_tpu_info(), "vmem_capacity_bytes", 0))
    except Exception:
        phys = 0
    if phys <= 0:
        phys = 64 << 20   # conservative default (v7x per-TC); also valid on v5e/v6e
    return max(16 << 20, phys - (8 << 20))


def _layer_norm(h, gamma, beta, *, inv_n, n_pad):
    """LayerNorm over the last axis (biased variance, eps=1e-5), two-pass.

    `h` may carry zero-padded lanes past the true feature count; `inv_n` is
    1/true_dim and the `n_pad * mu^2` term removes the padded lanes'
    contribution to the centered sum of squares, so statistics match torch's
    two-pass LayerNorm exactly.  gamma/beta are zero in padded lanes, so padded
    outputs stay exactly 0 (safe to feed into the next zero-padded matmul).
    """
    mu = jnp.sum(h, axis=-1, keepdims=True) * inv_n
    c = h - mu
    ss = jnp.sum(c * c, axis=-1, keepdims=True) - n_pad * (mu * mu)
    var = jnp.maximum(ss * inv_n, 0.0)
    return c * jax.lax.rsqrt(var + LN_EPS) * gamma + beta


def _mlp_kernel(x_ref,
                w1_ref, b1_ref, g1_ref, be1_ref,
                w2_ref, b2_ref, g2_ref, be2_ref,
                w3_ref, b3_ref,
                o_ref, *, inv_hidden, n_pad):
    x = x_ref[...]   # already in the weight (bf16) dtype — no in-kernel cast

    # Layer 1: Linear -> ReLU -> LayerNorm
    h = jnp.dot(x, w1_ref[...], preferred_element_type=jnp.float32) + b1_ref[...]
    h = jnp.maximum(h, 0.0)
    h = _layer_norm(h, g1_ref[...], be1_ref[...], inv_n=inv_hidden, n_pad=n_pad)

    # Layer 2: Linear -> ReLU -> LayerNorm
    h = jnp.dot(h.astype(w2_ref.dtype), w2_ref[...],
                preferred_element_type=jnp.float32) + b2_ref[...]
    h = jnp.maximum(h, 0.0)
    h = _layer_norm(h, g2_ref[...], be2_ref[...], inv_n=inv_hidden, n_pad=n_pad)

    # Output projection
    y = jnp.dot(h.astype(w3_ref.dtype), w3_ref[...],
                preferred_element_type=jnp.float32) + b3_ref[...]
    o_ref[...] = y.astype(o_ref.dtype)


def _build_call(kernel, tb, Bp, xp, hp, yp, out_dtype, single_buffer_params,
                vmem_limit_bytes):
    def param_spec(shape):
        if single_buffer_params:
            # Grid-invariant operands: one VMEM copy, no double buffering.
            return pl.BlockSpec(shape, lambda i: (0, 0),
                                pipeline_mode=pl.Buffered(1))
        return pl.BlockSpec(shape, lambda i: (0, 0))

    grid_spec = pltpu.PrefetchScalarGridSpec(
        num_scalar_prefetch=0,
        grid=(Bp // tb,),
        in_specs=[
            pl.BlockSpec((tb, xp), lambda i: (i, 0)),
            param_spec((xp, hp)), param_spec((1, hp)),
            param_spec((1, hp)), param_spec((1, hp)),
            param_spec((hp, hp)), param_spec((1, hp)),
            param_spec((1, hp)), param_spec((1, hp)),
            param_spec((hp, yp)), param_spec((1, yp)),
        ],
        out_specs=pl.BlockSpec((tb, yp), lambda i: (i, 0)),
    )
    return pl.pallas_call(
        kernel,
        out_shape=jax.ShapeDtypeStruct((Bp, yp), out_dtype),
        grid_spec=grid_spec,
        compiler_params=pltpu.CompilerParams(
            dimension_semantics=("parallel",),
            vmem_limit_bytes=vmem_limit_bytes,
        ),
    )


@functools.lru_cache(maxsize=None)
def _get_call(tb, Bp, xp, hp, yp, hidden, x_dtype_name, w_dtype_name,
              out_dtype_name):
    """Build and cache the pallas_call for one shape configuration.

    Whether single-buffered (Buffered(1)) parameter operands are accepted is
    resolved ONCE here via an abstract jit-lower probe; the forward path never
    pays a per-call try/except or a recompile.
    """
    x_dt = jnp.dtype(x_dtype_name)
    w_dt = jnp.dtype(w_dtype_name)
    out_dt = jnp.dtype(out_dtype_name)

    kernel = functools.partial(_mlp_kernel,
                               inv_hidden=1.0 / float(hidden),
                               n_pad=float(hp - hidden))

    cap = _vmem_cap_bytes()
    wbytes = ((xp * hp + hp * hp + hp * yp) * w_dt.itemsize
              + 7 * hp * 4 + yp * 4)

    def limit(param_copies):
        need = (param_copies * wbytes
                + 2 * tb * xp * x_dt.itemsize      # double-buffered input tiles
                + 2 * tb * yp * out_dt.itemsize    # double-buffered output tiles
                + 4 * tb * hp * 4                  # in-kernel f32 temporaries
                + (4 << 20))                       # slack
        return int(min(cap, max(32 << 20, need)))

    abstract_args = (
        jax.ShapeDtypeStruct((Bp, xp), x_dt),
        jax.ShapeDtypeStruct((xp, hp), w_dt), jax.ShapeDtypeStruct((1, hp), jnp.float32),
        jax.ShapeDtypeStruct((1, hp), jnp.float32), jax.ShapeDtypeStruct((1, hp), jnp.float32),
        jax.ShapeDtypeStruct((hp, hp), w_dt), jax.ShapeDtypeStruct((1, hp), jnp.float32),
        jax.ShapeDtypeStruct((1, hp), jnp.float32), jax.ShapeDtypeStruct((1, hp), jnp.float32),
        jax.ShapeDtypeStruct((hp, yp), w_dt), jax.ShapeDtypeStruct((1, yp), jnp.float32),
    )

    if hasattr(pl, "Buffered"):
        try:
            call = _build_call(kernel, tb, Bp, xp, hp, yp, out_dt, True, limit(1))
            jax.jit(call).lower(*abstract_args)   # probe trace + Mosaic lowering
            return call
        except Exception:
            pass

    # Fallback: plain constant-index blocked params (may double-buffer weights,
    # hence the 2x charge in the VMEM request).
    # TODO(synk): for very large hidden (bf16 weights > ~40 MiB) add a second
    # "arbitrary" grid axis tiling w2/w3 over their output dimension instead of
    # keeping all weights resident (needed on v7x's 64 MiB VMEM).
    return _build_call(kernel, tb, Bp, xp, hp, yp, out_dt, False, limit(2))


def _choose_batch_tile(B, xp, hp, yp, x_itemsize, out_itemsize, w_itemsize,
                       batch_tile):
    cap = _vmem_cap_bytes()
    wbytes = (xp * hp + hp * hp + hp * yp) * w_itemsize
    per_row = 2 * (xp * x_itemsize + yp * out_itemsize) + 4 * hp * 4
    avail = cap - 2 * wbytes - (4 << 20)          # conservative: 2x weights
    tb_max = max(SUBLANE, (max(avail, 0) // per_row) // SUBLANE * SUBLANE)

    Bp8 = _round_up(max(B, 1), SUBLANE)
    if batch_tile is None:
        # Fat tiles amortize the ~0.35 us per-grid-step overhead and the
        # per-step MXU weight push (512-row tiles ~85% of roofline vs 63% @256).
        tb = min(512, Bp8, tb_max)
        # v7x megacore: keep >= 2 grid steps so both TensorCores get work.
        if tb >= Bp8 and Bp8 > SUBLANE:
            tb = _round_up((Bp8 + 1) // 2, SUBLANE)
    else:
        tb = min(_round_up(batch_tile, SUBLANE), max(tb_max, SUBLANE))
    tb = max(tb, SUBLANE)
    Bp = _round_up(max(B, 1), tb)
    return tb, Bp


def prepare_params(params, *, weight_dtype=jnp.bfloat16):
    """One-time: zero-pad feature dims to lane multiples and cast weights.

    Call once at load time and reuse for every forward — keeps weight padding,
    casting, and the resulting HBM traffic off the per-call path.
    Weights are in (in, out) layout; vectors are (1, dim).
    """
    x_dim, hidden = params["w1"].shape
    y_dim = params["w3"].shape[1]
    xp = _round_up(x_dim, LANE)
    hp = _round_up(hidden, LANE)
    yp = _round_up(y_dim, LANE)

    def pad2(a, rows, cols, dtype):
        a = jnp.asarray(a, jnp.float32)
        a = jnp.pad(a, ((0, rows - a.shape[0]), (0, cols - a.shape[1])))
        return a.astype(dtype)

    f32 = jnp.float32
    packed = (
        pad2(params["w1"], xp, hp, weight_dtype), pad2(params["b1"], 1, hp, f32),
        pad2(params["g1"], 1, hp, f32), pad2(params["be1"], 1, hp, f32),
        pad2(params["w2"], hp, hp, weight_dtype), pad2(params["b2"], 1, hp, f32),
        pad2(params["g2"], 1, hp, f32), pad2(params["be2"], 1, hp, f32),
        pad2(params["w3"], hp, yp, weight_dtype), pad2(params["b3"], 1, yp, f32),
    )
    meta = dict(x_dim=int(x_dim), hidden=int(hidden), y_dim=int(y_dim),
                xp=xp, hp=hp, yp=yp, weight_dtype=jnp.dtype(weight_dtype))
    return packed, meta


def concept_residual_concept_pred(x, prepared, *, batch_tile=None,
                                  out_dtype=None):
    """Forward pass.  x: (..., x_dim).  Returns (..., y_dim) in `out_dtype`
    (defaults to x.dtype).  No host sync on this path."""
    packed, meta = prepared
    x_dim, hidden, y_dim = meta["x_dim"], meta["hidden"], meta["y_dim"]
    xp, hp, yp = meta["xp"], meta["hp"], meta["yp"]
    w_dt = meta["weight_dtype"]
    out_dt = jnp.dtype(out_dtype) if out_dtype is not None else jnp.dtype(x.dtype)

    lead = x.shape[:-1]
    assert x.shape[-1] == x_dim, "last dim of x must equal x_dim"
    x2 = x.reshape(-1, x_dim)
    B = x2.shape[0]

    tb, Bp = _choose_batch_tile(B, xp, hp, yp, w_dt.itemsize, out_dt.itemsize,
                                w_dt.itemsize, batch_tile)

    # Stream x in the (bf16) weight dtype: halves input DMA bytes and the x
    # double-buffer VMEM footprint; numerics are unchanged.
    x_p = jnp.pad(x2, ((0, Bp - B), (0, xp - x_dim))).astype(w_dt)

    call = _get_call(tb, Bp, xp, hp, yp, hidden,
                     w_dt.name, w_dt.name, out_dt.name)
    y_p = call(x_p, *packed)

    if Bp != B or yp != y_dim:
        y_p = y_p[:B, :y_dim]
    return y_p.reshape(lead + (y_dim,))


def init_params(key, x_dim, hidden_dim, y_dim):
    """Deterministic synthetic init (PyTorch-Linear-like uniform ranges)."""
    ks = jax.random.split(key, 6)

    def lin(kw, kb, fan_in, fan_out):
        bound = 1.0 / jnp.sqrt(fan_in)
        w = jax.random.uniform(kw, (fan_in, fan_out), jnp.float32, -bound, bound)
        b = jax.random.uniform(kb, (1, fan_out), jnp.float32, -bound, bound)
        return w, b

    w1, b1 = lin(ks[0], ks[1], x_dim, hidden_dim)
    w2, b2 = lin(ks[2], ks[3], hidden_dim, hidden_dim)
    w3, b3 = lin(ks[4], ks[5], hidden_dim, y_dim)
    ones = jnp.ones((1, hidden_dim), jnp.float32)
    zeros = jnp.zeros((1, hidden_dim), jnp.float32)
    return {
        "w1": w1, "b1": b1, "g1": ones, "be1": zeros,
        "w2": w2, "b2": b2, "g2": ones, "be2": zeros,
        "w3": w3, "b3": b3,
    }


def reference_forward(x, p, weight_dtype=jnp.bfloat16):
    """Pure-JAX reference with the same bf16-weight / f32-accumulate numerics."""
    def dot(a, w):
        return jnp.dot(a.astype(weight_dtype), w.astype(weight_dtype),
                       preferred_element_type=jnp.float32)

    def ln(h, g, b):
        mu = jnp.mean(h, axis=-1, keepdims=True)
        var = jnp.mean((h - mu) ** 2, axis=-1, keepdims=True)
        return (h - mu) * jax.lax.rsqrt(var + LN_EPS) * g + b

    h = jnp.maximum(dot(x, p["w1"]) + p["b1"], 0.0)
    h = ln(h, p["g1"], p["be1"])
    h = jnp.maximum(dot(h, p["w2"]) + p["b2"], 0.0)
    h = ln(h, p["g2"], p["be2"])
    return dot(h, p["w3"]) + p["b3"]


if __name__ == "__main__":
    key = jax.random.PRNGKey(0)
    kx, kp = jax.random.split(key)

    # Small demo shapes: a ragged batch (200) exercises batch padding and the
    # >=2-step grid split; feature dims (32/64/16) are padded to 128 lanes in
    # prepare_params and sliced back after the call.
    B, X_DIM, HIDDEN, Y_DIM = 200, 32, 64, 16
    x = jax.random.normal(kx, (B, X_DIM), jnp.float32)
    params = init_params(kp, X_DIM, HIDDEN, Y_DIM)

    prepared = prepare_params(params)              # one-time pad + bf16 cast
    y = concept_residual_concept_pred(x, prepared)
    y = jax.block_until_ready(y)

    y_ref = reference_forward(x, params)
    assert y.shape == (B, Y_DIM)
    assert jnp.allclose(y, y_ref, atol=1e-2, rtol=1e-2), "mismatch vs reference"

    print("KERNEL_OK")
</pallas_src>

<mosaic_0001>
module attributes {stable_mosaic.version = 11 : i64} {
  func.func @_mlp_kernel(%arg0: i32, %arg1: memref<104x128xbf16, #tpu.memory_space<vmem>>, %arg2: memref<128x128xbf16, #tpu.memory_space<vmem>>, %arg3: memref<1x128xf32, #tpu.memory_space<vmem>>, %arg4: memref<1x128xf32, #tpu.memory_space<vmem>>, %arg5: memref<1x128xf32, #tpu.memory_space<vmem>>, %arg6: memref<128x128xbf16, #tpu.memory_space<vmem>>, %arg7: memref<1x128xf32, #tpu.memory_space<vmem>>, %arg8: memref<1x128xf32, #tpu.memory_space<vmem>>, %arg9: memref<1x128xf32, #tpu.memory_space<vmem>>, %arg10: memref<128x128xbf16, #tpu.memory_space<vmem>>, %arg11: memref<1x128xf32, #tpu.memory_space<vmem>>, %arg12: memref<104x128xf32, #tpu.memory_space<vmem>>) attributes {dimension_semantics = [#tpu.dimension_semantics<parallel>], iteration_bounds = array<i64: 2>, scalar_prefetch = 0 : i64, scratch_operands = 0 : i64, tpu.core_type = #tpu.core_type<tc>, window_params = [{transform_indices = @transform_0, window_bounds = array<i64: 104, 128>}, {pipeline_mode = #tpu.pipeline_mode<synchronous>, transform_indices = @transform_1, window_bounds = array<i64: 128, 128>}, {pipeline_mode = #tpu.pipeline_mode<synchronous>, transform_indices = @transform_2, window_bounds = array<i64: 1, 128>}, {pipeline_mode = #tpu.pipeline_mode<synchronous>, transform_indices = @transform_3, window_bounds = array<i64: 1, 128>}, {pipeline_mode = #tpu.pipeline_mode<synchronous>, transform_indices = @transform_4, window_bounds = array<i64: 1, 128>}, {pipeline_mode = #tpu.pipeline_mode<synchronous>, transform_indices = @transform_5, window_bounds = array<i64: 128, 128>}, {pipeline_mode = #tpu.pipeline_mode<synchronous>, transform_indices = @transform_6, window_bounds = array<i64: 1, 128>}, {pipeline_mode = #tpu.pipeline_mode<synchronous>, transform_indices = @transform_7, window_bounds = array<i64: 1, 128>}, {pipeline_mode = #tpu.pipeline_mode<synchronous>, transform_indices = @transform_8, window_bounds = array<i64: 1, 128>}, {pipeline_mode = #tpu.pipeline_mode<synchronous>, transform_indices = @transform_9, window_bounds = array<i64: 128, 128>}, {pipeline_mode = #tpu.pipeline_mode<synchronous>, transform_indices = @transform_10, window_bounds = array<i64: 1, 128>}, {transform_indices = @transform_11, window_bounds = array<i64: 104, 128>}]} {
    %c0 = arith.constant 0 : index
    %c0_0 = arith.constant 0 : index
    %0 = vector.load %arg1[%c0, %c0_0] : memref<104x128xbf16, #tpu.memory_space<vmem>>, vector<104x128xbf16>
    %c0_1 = arith.constant 0 : index
    %c0_2 = arith.constant 0 : index
    %1 = vector.load %arg2[%c0_1, %c0_2] : memref<128x128xbf16, #tpu.memory_space<vmem>>, vector<128x128xbf16>
    %cst = arith.constant dense<0.000000e+00> : vector<104x128xf32>
    %2 = tpu.matmul %0, %1, %cst {dimension_numbers = #tpu.dot_dimension_numbers<[1], [0], [0], [1], [0, 0, 1, 1], [], []>} : vector<104x128xbf16>, vector<128x128xbf16>, vector<104x128xf32> -> vector<104x128xf32>
    %c0_3 = arith.constant 0 : index
    %c0_4 = arith.constant 0 : index
    %3 = vector.load %arg3[%c0_3, %c0_4] : memref<1x128xf32, #tpu.memory_space<vmem>>, vector<1x128xf32>
    %4 = vector.broadcast %3 : vector<1x128xf32> to vector<104x128xf32>
    %5 = arith.addf %2, %4 : vector<104x128xf32>
    %cst_5 = arith.constant 0.000000e+00 : f32
    %6 = vector.broadcast %cst_5 : f32 to vector<104x128xf32>
    %7 = arith.maximumf %5, %6 : vector<104x128xf32>
    %c0_6 = arith.constant 0 : index
    %c0_7 = arith.constant 0 : index
    %8 = vector.load %arg4[%c0_6, %c0_7] : memref<1x128xf32, #tpu.memory_space<vmem>>, vector<1x128xf32>
    %c0_8 = arith.constant 0 : index
    %c0_9 = arith.constant 0 : index
    %9 = vector.load %arg5[%c0_8, %c0_9] : memref<1x128xf32, #tpu.memory_space<vmem>>, vector<1x128xf32>
    %cst_10 = arith.constant dense<0.000000e+00> : vector<104xf32>
    %10 = vector.multi_reduction <add>, %7, %cst_10 [1] : vector<104x128xf32> to vector<104xf32>
    %11 = vector.shape_cast %10 : vector<104xf32> to vector<104x1xf32>
    %cst_11 = arith.constant 1.562500e-02 : f32
    %12 = vector.broadcast %cst_11 : f32 to vector<104x1xf32>
    %13 = arith.mulf %11, %12 : vector<104x1xf32>
    %14 = vector.broadcast %13 : vector<104x1xf32> to vector<104x128xf32>
    %15 = arith.subf %7, %14 : vector<104x128xf32>
    %16 = arith.mulf %15, %15 : vector<104x128xf32>
    %cst_12 = arith.constant dense<0.000000e+00> : vector<104xf32>
    %17 = vector.multi_reduction <add>, %16, %cst_12 [1] : vector<104x128xf32> to vector<104xf32>
    %18 = vector.shape_cast %17 : vector<104xf32> to vector<104x1xf32>
    %19 = arith.mulf %13, %13 : vector<104x1xf32>
    %cst_13 = arith.constant 6.400000e+01 : f32
    %20 = vector.broadcast %cst_13 : f32 to vector<104x1xf32>
    %21 = arith.mulf %20, %19 : vector<104x1xf32>
    %22 = arith.subf %18, %21 : vector<104x1xf32>
    %cst_14 = arith.constant 1.562500e-02 : f32
    %23 = vector.broadcast %cst_14 : f32 to vector<104x1xf32>
    %24 = arith.mulf %22, %23 : vector<104x1xf32>
    %cst_15 = arith.constant 0.000000e+00 : f32
    %25 = vector.broadcast %cst_15 : f32 to vector<104x1xf32>
    %26 = arith.maximumf %24, %25 : vector<104x1xf32>
    %cst_16 = arith.constant 9.99999974E-6 : f32
    %27 = vector.broadcast %cst_16 : f32 to vector<104x1xf32>
    %28 = arith.addf %26, %27 : vector<104x1xf32>
    %29 = math.rsqrt %28 : vector<104x1xf32>
    %30 = vector.broadcast %29 : vector<104x1xf32> to vector<104x128xf32>
    %31 = arith.mulf %15, %30 : vector<104x128xf32>
    %32 = vector.broadcast %8 : vector<1x128xf32> to vector<104x128xf32>
    %33 = arith.mulf %31, %32 : vector<104x128xf32>
    %34 = vector.broadcast %9 : vector<1x128xf32> to vector<104x128xf32>
    %35 = arith.addf %33, %34 : vector<104x128xf32>
    %36 = arith.truncf %35 : vector<104x128xf32> to vector<104x128xbf16>
    %c0_17 = arith.constant 0 : index
    %c0_18 = arith.constant 0 : index
    %37 = vector.load %arg6[%c0_17, %c0_18] : memref<128x128xbf16, #tpu.memory_space<vmem>>, vector<128x128xbf16>
    %cst_19 = arith.constant dense<0.000000e+00> : vector<104x128xf32>
    %38 = tpu.matmul %36, %37, %cst_19 {dimension_numbers = #tpu.dot_dimension_numbers<[1], [0], [0], [1], [0, 0, 1, 1], [], []>} : vector<104x128xbf16>, vector<128x128xbf16>, vector<104x128xf32> -> vector<104x128xf32>
    %c0_20 = arith.constant 0 : index
    %c0_21 = arith.constant 0 : index
    %39 = vector.load %arg7[%c0_20, %c0_21] : memref<1x128xf32, #tpu.memory_space<vmem>>, vector<1x128xf32>
    %40 = vector.broadcast %39 : vector<1x128xf32> to vector<104x128xf32>
    %41 = arith.addf %38, %40 : vector<104x128xf32>
    %cst_22 = arith.constant 0.000000e+00 : f32
    %42 = vector.broadcast %cst_22 : f32 to vector<104x128xf32>
    %43 = arith.maximumf %41, %42 : vector<104x128xf32>
    %c0_23 = arith.constant 0 : index
    %c0_24 = arith.constant 0 : index
    %44 = vector.load %arg8[%c0_23, %c0_24] : memref<1x128xf32, #tpu.memory_space<vmem>>, vector<1x128xf32>
    %c0_25 = arith.constant 0 : index
    %c0_26 = arith.constant 0 : index
    %45 = vector.load %arg9[%c0_25, %c0_26] : memref<1x128xf32, #tpu.memory_space<vmem>>, vector<1x128xf32>
    %cst_27 = arith.constant dense<0.000000e+00> : vector<104xf32>
    %46 = vector.multi_reduction <add>, %43, %cst_27 [1] : vector<104x128xf32> to vector<104xf32>
    %47 = vector.shape_cast %46 : vector<104xf32> to vector<104x1xf32>
    %cst_28 = arith.constant 1.562500e-02 : f32
    %48 = vector.broadcast %cst_28 : f32 to vector<104x1xf32>
    %49 = arith.mulf %47, %48 : vector<104x1xf32>
    %50 = vector.broadcast %49 : vector<104x1xf32> to vector<104x128xf32>
    %51 = arith.subf %43, %50 : vector<104x128xf32>
    %52 = arith.mulf %51, %51 : vector<104x128xf32>
    %cst_29 = arith.constant dense<0.000000e+00> : vector<104xf32>
    %53 = vector.multi_reduction <add>, %52, %cst_29 [1] : vector<104x128xf32> to vector<104xf32>
    %54 = vector.shape_cast %53 : vector<104xf32> to vector<104x1xf32>
    %55 = arith.mulf %49, %49 : vector<104x1xf32>
    %cst_30 = arith.constant 6.400000e+01 : f32
    %56 = vector.broadcast %cst_30 : f32 to vector<104x1xf32>
    %57 = arith.mulf %56, %55 : vector<104x1xf32>
    %58 = arith.subf %54, %57 : vector<104x1xf32>
    %cst_31 = arith.constant 1.562500e-02 : f32
    %59 = vector.broadcast %cst_31 : f32 to vector<104x1xf32>
    %60 = arith.mulf %58, %59 : vector<104x1xf32>
    %cst_32 = arith.constant 0.000000e+00 : f32
    %61 = vector.broadcast %cst_32 : f32 to vector<104x1xf32>
    %62 = arith.maximumf %60, %61 : vector<104x1xf32>
    %cst_33 = arith.constant 9.99999974E-6 : f32
    %63 = vector.broadcast %cst_33 : f32 to vector<104x1xf32>
    %64 = arith.addf %62, %63 : vector<104x1xf32>
    %65 = math.rsqrt %64 : vector<104x1xf32>
    %66 = vector.broadcast %65 : vector<104x1xf32> to vector<104x128xf32>
    %67 = arith.mulf %51, %66 : vector<104x128xf32>
    %68 = vector.broadcast %44 : vector<1x128xf32> to vector<104x128xf32>
    %69 = arith.mulf %67, %68 : vector<104x128xf32>
    %70 = vector.broadcast %45 : vector<1x128xf32> to vector<104x128xf32>
    %71 = arith.addf %69, %70 : vector<104x128xf32>
    %72 = arith.truncf %71 : vector<104x128xf32> to vector<104x128xbf16>
    %c0_34 = arith.constant 0 : index
    %c0_35 = arith.constant 0 : index
    %73 = vector.load %arg10[%c0_34, %c0_35] : memref<128x128xbf16, #tpu.memory_space<vmem>>, vector<128x128xbf16>
    %cst_36 = arith.constant dense<0.000000e+00> : vector<104x128xf32>
    %74 = tpu.matmul %72, %73, %cst_36 {dimension_numbers = #tpu.dot_dimension_numbers<[1], [0], [0], [1], [0, 0, 1, 1], [], []>} : vector<104x128xbf16>, vector<128x128xbf16>, vector<104x128xf32> -> vector<104x128xf32>
    %c0_37 = arith.constant 0 : index
    %c0_38 = arith.constant 0 : index
    %75 = vector.load %arg11[%c0_37, %c0_38] : memref<1x128xf32, #tpu.memory_space<vmem>>, vector<1x128xf32>
    %76 = vector.broadcast %75 : vector<1x128xf32> to vector<104x128xf32>
    %77 = arith.addf %74, %76 : vector<104x128xf32>
    %c0_39 = arith.constant 0 : index
    %c0_40 = arith.constant 0 : index
    %78 = vector.load %arg12[%c0_39, %c0_40] : memref<104x128xf32, #tpu.memory_space<vmem>>, vector<104x128xf32>
    tpu.vector_store %arg12[%c0_39, %c0_40], %77 {strides = array<i32>} : memref<104x128xf32, #tpu.memory_space<vmem>>, vector<104x128xf32>,
    return
  }
  func.func @transform_0(%arg0: i32) -> (i32, i32) {
    %c0_i32 = arith.constant 0 : i32
    %c0_i32_0 = arith.constant 0 : i32
    return %arg0, %c0_i32 : i32, i32
  }
  func.func @transform_1(%arg0: i32) -> (i32, i32) {
    %c0_i32 = arith.constant 0 : i32
    %c0_i32_0 = arith.constant 0 : i32
    %c0_i32_1 = arith.constant 0 : i32
    return %c0_i32, %c0_i32_0 : i32, i32
  }
  func.func @transform_2(%arg0: i32) -> (i32, i32) {
    %c0_i32 = arith.constant 0 : i32
    %c0_i32_0 = arith.constant 0 : i32
    %c0_i32_1 = arith.constant 0 : i32
    return %c0_i32, %c0_i32_0 : i32, i32
  }
  func.func @transform_3(%arg0: i32) -> (i32, i32) {
    %c0_i32 = arith.constant 0 : i32
    %c0_i32_0 = arith.constant 0 : i32
    %c0_i32_1 = arith.constant 0 : i32
    return %c0_i32, %c0_i32_0 : i32, i32
  }
  func.func @transform_4(%arg0: i32) -> (i32, i32) {
    %c0_i32 = arith.constant 0 : i32
    %c0_i32_0 = arith.constant 0 : i32
    %c0_i32_1 = arith.constant 0 : i32
    return %c0_i32, %c0_i32_0 : i32, i32
  }
  func.func @transform_5(%arg0: i32) -> (i32, i32) {
    %c0_i32 = arith.constant 0 : i32
    %c0_i32_0 = arith.constant 0 : i32
    %c0_i32_1 = arith.constant 0 : i32
    return %c0_i32, %c0_i32_0 : i32, i32
  }
  func.func @transform_6(%arg0: i32) -> (i32, i32) {
    %c0_i32 = arith.constant 0 : i32
    %c0_i32_0 = arith.constant 0 : i32
    %c0_i32_1 = arith.constant 0 : i32
    return %c0_i32, %c0_i32_0 : i32, i32
  }
  func.func @transform_7(%arg0: i32) -> (i32, i32) {
    %c0_i32 = arith.constant 0 : i32
    %c0_i32_0 = arith.constant 0 : i32
    %c0_i32_1 = arith.constant 0 : i32
    return %c0_i32, %c0_i32_0 : i32, i32
  }
  func.func @transform_8(%arg0: i32) -> (i32, i32) {
    %c0_i32 = arith.constant 0 : i32
    %c0_i32_0 = arith.constant 0 : i32
    %c0_i32_1 = arith.constant 0 : i32
    return %c0_i32, %c0_i32_0 : i32, i32
  }
  func.func @transform_9(%arg0: i32) -> (i32, i32) {
    %c0_i32 = arith.constant 0 : i32
    %c0_i32_0 = arith.constant 0 : i32
    %c0_i32_1 = arith.constant 0 : i32
    return %c0_i32, %c0_i32_0 : i32, i32
  }
  func.func @transform_10(%arg0: i32) -> (i32, i32) {
    %c0_i32 = arith.constant 0 : i32
    %c0_i32_0 = arith.constant 0 : i32
    %c0_i32_1 = arith.constant 0 : i32
    return %c0_i32, %c0_i32_0 : i32, i32
  }
  func.func @transform_11(%arg0: i32) -> (i32, i32) {
    %c0_i32 = arith.constant 0 : i32
    %c0_i32_0 = arith.constant 0 : i32
    return %arg0, %c0_i32 : i32, i32
  }
}

</mosaic_0001>

<llo_original>
// kernel: tpu_custom_call.1
$region0: #{tpu_custom_call.1}
  #allocation0 [shape = 'u32[]', space=smem, size = 0x4, offset = 0x4, fixed_abs, tag = 'smem constant byte address 0x4 - core index']
  #allocation1 [shape = 'u32[144,128]{1,0:T(1,128)}', space=vmem, size = 0x12000, scoped, tag = 'internal scratch']
  %s0 = inlined_call_operand.hbm [shape: bf16[208,128], index: 0, kind: input, shape index: {}]
  %s1 = inlined_call_operand.hbm [shape: bf16[128,128], index: 1, kind: input, shape index: {}]
  %s2 = inlined_call_operand.vmem [shape: f32[1,128], index: 2, kind: input, shape index: {}]
  %s3 = inlined_call_operand.vmem [shape: f32[1,128], index: 3, kind: input, shape index: {}]
  %s4 = inlined_call_operand.vmem [shape: f32[1,128], index: 4, kind: input, shape index: {}]
  %s5 = inlined_call_operand.hbm [shape: bf16[128,128], index: 5, kind: input, shape index: {}]
  %s6 = inlined_call_operand.vmem [shape: f32[1,128], index: 6, kind: input, shape index: {}]
  %s7 = inlined_call_operand.vmem [shape: f32[1,128], index: 7, kind: input, shape index: {}]
  %s8 = inlined_call_operand.vmem [shape: f32[1,128], index: 8, kind: input, shape index: {}]
  %s9 = inlined_call_operand.hbm [shape: bf16[128,128], index: 9, kind: input, shape index: {}]
  %s10 = inlined_call_operand.vmem [shape: f32[1,128], index: 10, kind: input, shape index: {}]
  %s11 = inlined_call_operand.hbm [shape: f32[208,128], index: 11, kind: output, shape index: {}]
  %s12 = sld [smem:[#allocation0]]
  $region93: #{tpu_custom_call.1} parent=0
    _
  %s14 = ssub.s32 1, %s12
  %s15 = scalar_select 0, %s14, %s12
  $region1: #{tpu_custom_call.1} parent=0
    #allocation2 [shape = 'u8[53248]{0}', space=vmem, size = 0xd000, scoped, tag = 'input window, operand 0']
    #allocation3 [shape = 's32[2]{0}', space=sflag, size = 0x8, scoped, tag = 'scoped memory for tpu_custom_call.1']
    #allocation4 [shape = 's32[2]{0}', space=sflag, size = 0x8, scoped, tag = 'scoped memory for tpu_custom_call.1']
    #allocation5 [shape = 'u8[32768]{0}', space=vmem, size = 0x8000, scoped, tag = 'input window, operand 1, single buffered']
    #allocation6 [shape = 's32[1]{0}', space=sflag, size = 0x4, scoped, tag = 'scoped memory for tpu_custom_call.1']
    #allocation7 [shape = 'u8[32768]{0}', space=vmem, size = 0x8000, scoped, tag = 'input window, operand 5, single buffered']
    #allocation8 [shape = 'u8[32768]{0}', space=vmem, size = 0x8000, scoped, tag = 'input window, operand 9, single buffered']
    #allocation9 [shape = 's32[1]{0}', space=sflag, size = 0x4, scoped, tag = 'scoped memory for tpu_custom_call.1']
    #allocation10 [shape = 'u8[106496]{0}', space=vmem, size = 0x1a000, scoped, tag = 'output window, operand 0']
    %16 = vsyncpa [#allocation3], 0
    %s17 = scalar_lea.sflag [#allocation3], 1
    %18 = vsyncpa %s17, 0
    %19 = vsyncpa [#allocation6], 0
    %20 = vsyncpa [#allocation9], 0
    %21 = vsyncpa [#allocation4], 0
    %s22 = scalar_lea.sflag [#allocation4], 1
    %23 = vsyncpa %s22, 0
    loop: start=0, step=1, limit=4
    $region2: #{tpu_custom_call.1} parent=1 // loop_pre_header
      _
    $region3: #{tpu_custom_call.1} parent=1 // loop_header
      %s25 = sphi 0, %s29
      %p26 = scmp.ge.s32.totalorder %s25, 4
      %s35 = sphi 0, %s37
      %s38 = sphi 0, %s35
      %s39 = sphi 0, %s38
      %s55 = sphi 0, %s39
      %s59 = sphi 0, %s59
      %s61 = sphi 0, %s59
      %s62 = sphi 0, %s61
      %s76 = sphi 0, %s62
      %s80 = sphi 0, %s80
      %s82 = sphi 0, %s80
      %s83 = sphi 0, %s82
      %s97 = sphi 0, %s83
      %s101 = sphi 0, %s101
      %s103 = sphi 0, %s101
      %s104 = sphi 0, %s103
      %s118 = sphi 0, %s104
      %s122 = sphi 0, %s122
      %s124 = sphi 0, %s122
      %s125 = sphi 0, %s124
      %s139 = sphi 0, %s125
      %s143 = sphi 0, %s143
      %s145 = sphi 0, %s143
      %s146 = sphi 0, %s145
      %s160 = sphi 0, %s146
      %s164 = sphi 0, %s164
      %s166 = sphi 0, %s164
      %s167 = sphi 0, %s166
      %s181 = sphi 0, %s167
      %s185 = sphi 0, %s185
      %s187 = sphi 0, %s185
      %s188 = sphi 0, %s187
      %s202 = sphi 0, %s188
      %s206 = sphi 0, %s206
      %s208 = sphi 0, %s206
      %s209 = sphi 0, %s208
      %s223 = sphi 0, %s209
      %s227 = sphi 0, %s227
      %s229 = sphi 0, %s227
      %s230 = sphi 0, %s229
      %s244 = sphi 0, %s230
      %s248 = sphi 0, %s248
      %s250 = sphi 0, %s248
      %s251 = sphi 0, %s250
      %s265 = sphi 0, %s251
      %s271 = sphi 0, %s273
      %s274 = sphi 0, %s271
      %s275 = sphi 0, %s274
      %s291 = sphi 0, %s275
    $region4: #{tpu_custom_call.1} parent=1 // loop_header_branch
      %28 = sbr.rel (%p26) target = $region8
    $region5: #{tpu_custom_call.1} parent=1 // loop_body
      %s30 = ssub.s32 %s25, 1
      %s31 = ssub.s32 %s25, 2
      %s32 = sadd.s32 %s25, 1
      %s33 = ssub.s32 %s25, %s32
      %p34 = scmp.eq.s32.totalorder %s33, 0
      %s36 = sadd.s32 %s35, 1
      %s37 = scalar_select %p34, %s35, %s36
      %p40 = pneg %p34
      %p41 = scmp.eq.s32.totalorder %s25, 1
      %p42 = por %p40, %p41
      %p43 = scmp.ne.s32.totalorder %s35, %s38
      %p44 = scmp.eq.s32.totalorder %s25, 0
      %p45 = por %p43, %p44
      %p46 = scmp.ne.s32.totalorder %s35, %s38
      %p47 = scmp.eq.s32.totalorder %s30, 1
      %p48 = por %p46, %p47
      %p49 = scmp.ne.s32.totalorder %s38, %s39
      %p50 = scmp.eq.s32.totalorder %s30, 0
      %p51 = por %p49, %p50
      %p52 = scmp.ne.s32.totalorder %s38, %s39
      %p53 = scmp.eq.s32.totalorder %s31, 1
      %p54 = por %p52, %p53
      %p56 = scmp.ne.s32.totalorder %s39, %s55
      %p57 = scmp.eq.s32.totalorder %s31, 0
      %p58 = por %p56, %p57
      %s60 = sadd.s32 %s59, 1
      %p63 = scmp.eq.s32.totalorder %s25, 1
      %p64 = scmp.ne.s32.totalorder %s59, %s61
      %p65 = scmp.eq.s32.totalorder %s25, 0
      %p66 = por %p64, %p65
      %p67 = scmp.ne.s32.totalorder %s59, %s61
      %p68 = scmp.eq.s32.totalorder %s30, 1
      %p69 = por %p67, %p68
      %p70 = scmp.ne.s32.totalorder %s61, %s62
      %p71 = scmp.eq.s32.totalorder %s30, 0
      %p72 = por %p70, %p71
      %p73 = scmp.ne.s32.totalorder %s61, %s62
      %p74 = scmp.eq.s32.totalorder %s31, 1
      %p75 = por %p73, %p74
      %p77 = scmp.ne.s32.totalorder %s62, %s76
      %p78 = scmp.eq.s32.totalorder %s31, 0
      %p79 = por %p77, %p78
      %s81 = sadd.s32 %s80, 1
      %p84 = scmp.eq.s32.totalorder %s25, 1
      %p85 = scmp.ne.s32.totalorder %s80, %s82
      %p86 = scmp.eq.s32.totalorder %s25, 0
      %p87 = por %p85, %p86
      %p88 = scmp.ne.s32.totalorder %s80, %s82
      %p89 = scmp.eq.s32.totalorder %s30, 1
      %p90 = por %p88, %p89
      %p91 = scmp.ne.s32.totalorder %s82, %s83
      %p92 = scmp.eq.s32.totalorder %s30, 0
      %p93 = por %p91, %p92
      %p94 = scmp.ne.s32.totalorder %s82, %s83
      %p95 = scmp.eq.s32.totalorder %s31, 1
      %p96 = por %p94, %p95
      %p98 = scmp.ne.s32.totalorder %s83, %s97
      %p99 = scmp.eq.s32.totalorder %s31, 0
      %p100 = por %p98, %p99
      %s102 = sadd.s32 %s101, 1
      %p105 = scmp.eq.s32.totalorder %s25, 1
      %p106 = scmp.ne.s32.totalorder %s101, %s103
      %p107 = scmp.eq.s32.totalorder %s25, 0
      %p108 = por %p106, %p107
      %p109 = scmp.ne.s32.totalorder %s101, %s103
      %p110 = scmp.eq.s32.totalorder %s30, 1
      %p111 = por %p109, %p110
      %p112 = scmp.ne.s32.totalorder %s103, %s104
      %p113 = scmp.eq.s32.totalorder %s30, 0
      %p114 = por %p112, %p113
      %p115 = scmp.ne.s32.totalorder %s103, %s104
      %p116 = scmp.eq.s32.totalorder %s31, 1
      %p117 = por %p115, %p116
      %p119 = scmp.ne.s32.totalorder %s104, %s118
      %p120 = scmp.eq.s32.totalorder %s31, 0
      %p121 = por %p119, %p120
      %s123 = sadd.s32 %s122, 1
      %p126 = scmp.eq.s32.totalorder %s25, 1
      %p127 = scmp.ne.s32.totalorder %s122, %s124
      %p128 = scmp.eq.s32.totalorder %s25, 0
      %p129 = por %p127, %p128
      %p130 = scmp.ne.s32.totalorder %s122, %s124
      %p131 = scmp.eq.s32.totalorder %s30, 1
      %p132 = por %p130, %p131
      %p133 = scmp.ne.s32.totalorder %s124, %s125
      %p134 = scmp.eq.s32.totalorder %s30, 0
      %p135 = por %p133, %p134
      %p136 = scmp.ne.s32.totalorder %s124, %s125
      %p137 = scmp.eq.s32.totalorder %s31, 1
      %p138 = por %p136, %p137
      %p140 = scmp.ne.s32.totalorder %s125, %s139
      %p141 = scmp.eq.s32.totalorder %s31, 0
      %p142 = por %p140, %p141
      %s144 = sadd.s32 %s143, 1
      %p147 = scmp.eq.s32.totalorder %s25, 1
      %p148 = scmp.ne.s32.totalorder %s143, %s145
      %p149 = scmp.eq.s32.totalorder %s25, 0
      %p150 = por %p148, %p149
      %p151 = scmp.ne.s32.totalorder %s143, %s145
      %p152 = scmp.eq.s32.totalorder %s30, 1
      %p153 = por %p151, %p152
      %p154 = scmp.ne.s32.totalorder %s145, %s146
      %p155 = scmp.eq.s32.totalorder %s30, 0
      %p156 = por %p154, %p155
      %p157 = scmp.ne.s32.totalorder %s145, %s146
      %p158 = scmp.eq.s32.totalorder %s31, 1
      %p159 = por %p157, %p158
      %p161 = scmp.ne.s32.totalorder %s146, %s160
      %p162 = scmp.eq.s32.totalorder %s31, 0
      %p163 = por %p161, %p162
      %s165 = sadd.s32 %s164, 1
      %p168 = scmp.eq.s32.totalorder %s25, 1
      %p169 = scmp.ne.s32.totalorder %s164, %s166
      %p170 = scmp.eq.s32.totalorder %s25, 0
      %p171 = por %p169, %p170
      %p172 = scmp.ne.s32.totalorder %s164, %s166
      %p173 = scmp.eq.s32.totalorder %s30, 1
      %p174 = por %p172, %p173
      %p175 = scmp.ne.s32.totalorder %s166, %s167
      %p176 = scmp.eq.s32.totalorder %s30, 0
      %p177 = por %p175, %p176
      %p178 = scmp.ne.s32.totalorder %s166, %s167
      %p179 = scmp.eq.s32.totalorder %s31, 1
      %p180 = por %p178, %p179
      %p182 = scmp.ne.s32.totalorder %s167, %s181
      %p183 = scmp.eq.s32.totalorder %s31, 0
      %p184 = por %p182, %p183
      %s186 = sadd.s32 %s185, 1
      %p189 = scmp.eq.s32.totalorder %s25, 1
      %p190 = scmp.ne.s32.totalorder %s185, %s187
      %p191 = scmp.eq.s32.totalorder %s25, 0
      %p192 = por %p190, %p191
      %p193 = scmp.ne.s32.totalorder %s185, %s187
      %p194 = scmp.eq.s32.totalorder %s30, 1
      %p195 = por %p193, %p194
      %p196 = scmp.ne.s32.totalorder %s187, %s188
      %p197 = scmp.eq.s32.totalorder %s30, 0
      %p198 = por %p196, %p197
      %p199 = scmp.ne.s32.totalorder %s187, %s188
      %p200 = scmp.eq.s32.totalorder %s31, 1
      %p201 = por %p199, %p200
      %p203 = scmp.ne.s32.totalorder %s188, %s202
      %p204 = scmp.eq.s32.totalorder %s31, 0
      %p205 = por %p203, %p204
      %s207 = sadd.s32 %s206, 1
      %p210 = scmp.eq.s32.totalorder %s25, 1
      %p211 = scmp.ne.s32.totalorder %s206, %s208
      %p212 = scmp.eq.s32.totalorder %s25, 0
      %p213 = por %p211, %p212
      %p214 = scmp.ne.s32.totalorder %s206, %s208
      %p215 = scmp.eq.s32.totalorder %s30, 1
      %p216 = por %p214, %p215
      %p217 = scmp.ne.s32.totalorder %s208, %s209
      %p218 = scmp.eq.s32.totalorder %s30, 0
      %p219 = por %p217, %p218
      %p220 = scmp.ne.s32.totalorder %s208, %s209
      %p221 = scmp.eq.s32.totalorder %s31, 1
      %p222 = por %p220, %p221
      %p224 = scmp.ne.s32.totalorder %s209, %s223
      %p225 = scmp.eq.s32.totalorder %s31, 0
      %p226 = por %p224, %p225
      %s228 = sadd.s32 %s227, 1
      %p231 = scmp.eq.s32.totalorder %s25, 1
      %p232 = scmp.ne.s32.totalorder %s227, %s229
      %p233 = scmp.eq.s32.totalorder %s25, 0
      %p234 = por %p232, %p233
      %p235 = scmp.ne.s32.totalorder %s227, %s229
      %p236 = scmp.eq.s32.totalorder %s30, 1
      %p237 = por %p235, %p236
      %p238 = scmp.ne.s32.totalorder %s229, %s230
      %p239 = scmp.eq.s32.totalorder %s30, 0
      %p240 = por %p238, %p239
      %p241 = scmp.ne.s32.totalorder %s229, %s230
      %p242 = scmp.eq.s32.totalorder %s31, 1
      %p243 = por %p241, %p242
      %p245 = scmp.ne.s32.totalorder %s230, %s244
      %p246 = scmp.eq.s32.totalorder %s31, 0
      %p247 = por %p245, %p246
      %s249 = sadd.s32 %s248, 1
      %p252 = scmp.eq.s32.totalorder %s25, 1
      %p253 = scmp.ne.s32.totalorder %s248, %s250
      %p254 = scmp.eq.s32.totalorder %s25, 0
      %p255 = por %p253, %p254
      %p256 = scmp.ne.s32.totalorder %s248, %s250
      %p257 = scmp.eq.s32.totalorder %s30, 1
      %p258 = por %p256, %p257
      %p259 = scmp.ne.s32.totalorder %s250, %s251
      %p260 = scmp.eq.s32.totalorder %s30, 0
      %p261 = por %p259, %p260
      %p262 = scmp.ne.s32.totalorder %s250, %s251
      %p263 = scmp.eq.s32.totalorder %s31, 1
      %p264 = por %p262, %p263
      %p266 = scmp.ne.s32.totalorder %s251, %s265
      %p267 = scmp.eq.s32.totalorder %s31, 0
      %p268 = por %p266, %p267
      %s269 = ssub.s32 %s25, %s32
      %p270 = scmp.eq.s32.totalorder %s269, 0
      %s272 = sadd.s32 %s271, 1
      %s273 = scalar_select %p270, %s271, %s272
      %p276 = pneg %p270
      %p277 = scmp.eq.s32.totalorder %s25, 1
      %p278 = por %p276, %p277
      %p279 = scmp.ne.s32.totalorder %s271, %s274
      %p280 = scmp.eq.s32.totalorder %s25, 0
      %p281 = por %p279, %p280
      %p282 = scmp.ne.s32.totalorder %s271, %s274
      %p283 = scmp.eq.s32.totalorder %s30, 1
      %p284 = por %p282, %p283
      %p285 = scmp.ne.s32.totalorder %s274, %s275
      %p286 = scmp.eq.s32.totalorder %s30, 0
      %p287 = por %p285, %p286
      %p288 = scmp.ne.s32.totalorder %s274, %s275
      %p289 = scmp.eq.s32.totalorder %s31, 1
      %p290 = por %p288, %p289
      %p292 = scmp.ne.s32.totalorder %s275, %s291
      %p293 = scmp.eq.s32.totalorder %s31, 0
      %p294 = por %p292, %p293
      %p295 = scmp.le.s32.totalorder 1, %s25
      %p296 = scmp.lt.s32.totalorder %s25, 3
      %p297 = pnand %p295, %p296
      %p298 = pneg %p297
      // Predicated region
      $region9: #{tpu_custom_call.1} parent=5 // pred_check
        _
      $region10: #{tpu_custom_call.1} parent=5 // pred_check_branch
        %300 = sbr.rel (%p297) target = $region12
      $region11: #{tpu_custom_call.1} parent=5 // pred_region
        %s301 = ssub.s32 %s25, 1
        // Predicated region
        $region13: #{tpu_custom_call.1} parent=11 // pred_check
          %p302 = pneg %p72
        $region14: #{tpu_custom_call.1} parent=11 // pred_check_branch
          %304 = sbr.rel (%p302) target = $region16
        $region15: #{tpu_custom_call.1} parent=11 // pred_region
          %s306 = ssub.s32 1024, 1024
          %307 = vsyncadd [#allocation6], %s306
          %s308 = sshll.u32 [#allocation5], 4
          %s309 = int_to_ptr.vmem [resolvable:$true] %s308
          %314 = dma.hbm_to_vmem [thread:$0]  %s1, 1024, %s309, [#allocation6], 64, 64, 4
        $region16: #{tpu_custom_call.1} parent=11 // pred_fallthru
          _
        // Predicated region
        $region17: #{tpu_custom_call.1} parent=11 // pred_check
          %p315 = pneg %p93
        $region18: #{tpu_custom_call.1} parent=11 // pred_check_branch
          %317 = sbr.rel (%p315) target = $region20
        $region19: #{tpu_custom_call.1} parent=11 // pred_region
          _
        $region20: #{tpu_custom_call.1} parent=11 // pred_fallthru
          _
        // Predicated region
        $region21: #{tpu_custom_call.1} parent=11 // pred_check
          %p318 = pneg %p114
        $region22: #{tpu_custom_call.1} parent=11 // pred_check_branch
          %320 = sbr.rel (%p318) target = $region24
        $region23: #{tpu_custom_call.1} parent=11 // pred_region
          _
        $region24: #{tpu_custom_call.1} parent=11 // pred_fallthru
          _
        // Predicated region
        $region25: #{tpu_custom_call.1} parent=11 // pred_check
          %p321 = pneg %p135
        $region26: #{tpu_custom_call.1} parent=11 // pred_check_branch
          %323 = sbr.rel (%p321) target = $region28
        $region27: #{tpu_custom_call.1} parent=11 // pred_region
          _
        $region28: #{tpu_custom_call.1} parent=11 // pred_fallthru
          _
        // Predicated region
        $region29: #{tpu_custom_call.1} parent=11 // pred_check
          %p324 = pneg %p156
        $region30: #{tpu_custom_call.1} parent=11 // pred_check_branch
          %326 = sbr.rel (%p324) target = $region32
        $region31: #{tpu_custom_call.1} parent=11 // pred_region
          %s328 = ssub.s32 1024, 1024
          %329 = vsyncadd [#allocation6], %s328
          %s330 = sshll.u32 [#allocation7], 4
          %s331 = int_to_ptr.vmem [resolvable:$true] %s330
          %336 = dma.hbm_to_vmem [thread:$0]  %s5, 1024, %s331, [#allocation6], 64, 64, 4
        $region32: #{tpu_custom_call.1} parent=11 // pred_fallthru
          _
        // Predicated region
        $region33: #{tpu_custom_call.1} parent=11 // pred_check
          %p337 = pneg %p177
        $region34: #{tpu_custom_call.1} parent=11 // pred_check_branch
          %339 = sbr.rel (%p337) target = $region36
        $region35: #{tpu_custom_call.1} parent=11 // pred_region
          _
        $region36: #{tpu_custom_call.1} parent=11 // pred_fallthru
          _
        // Predicated region
        $region37: #{tpu_custom_call.1} parent=11 // pred_check
          %p340 = pneg %p198
        $region38: #{tpu_custom_call.1} parent=11 // pred_check_branch
          %342 = sbr.rel (%p340) target = $region40
        $region39: #{tpu_custom_call.1} parent=11 // pred_region
          _
        $region40: #{tpu_custom_call.1} parent=11 // pred_fallthru
          _
        // Predicated region
        $region41: #{tpu_custom_call.1} parent=11 // pred_check
          %p343 = pneg %p219
        $region42: #{tpu_custom_call.1} parent=11 // pred_check_branch
          %345 = sbr.rel (%p343) target = $region44
        $region43: #{tpu_custom_call.1} parent=11 // pred_region
          _
        $region44: #{tpu_custom_call.1} parent=11 // pred_fallthru
          _
        // Predicated region
        $region45: #{tpu_custom_call.1} parent=11 // pred_check
          %p346 = pneg %p240
        $region46: #{tpu_custom_call.1} parent=11 // pred_check_branch
          %348 = sbr.rel (%p346) target = $region48
        $region47: #{tpu_custom_call.1} parent=11 // pred_region
          %s350 = ssub.s32 1024, 1024
          %351 = vsyncadd [#allocation9], %s350
          %s352 = sshll.u32 [#allocation8], 4
          %s353 = int_to_ptr.vmem [resolvable:$true] %s352
          %358 = dma.hbm_to_vmem [thread:$0]  %s9, 1024, %s353, [#allocation9], 64, 64, 4
        $region48: #{tpu_custom_call.1} parent=11 // pred_fallthru
          _
        // Predicated region
        $region49: #{tpu_custom_call.1} parent=11 // pred_check
          %p359 = pneg %p261
        $region50: #{tpu_custom_call.1} parent=11 // pred_check_branch
          %361 = sbr.rel (%p359) target = $region52
        $region51: #{tpu_custom_call.1} parent=11 // pred_region
          _
        $region52: #{tpu_custom_call.1} parent=11 // pred_fallthru
          _
      $region12: #{tpu_custom_call.1} parent=5 // pred_fallthru
        _
      %p362 = scmp.lt.s32.totalorder %s25, 2
      // Predicated region
      $region53: #{tpu_custom_call.1} parent=5 // pred_check
        %p363 = pneg %p362
      $region54: #{tpu_custom_call.1} parent=5 // pred_check_branch
        %365 = sbr.rel (%p363) target = $region56
      $region55: #{tpu_custom_call.1} parent=5 // pred_region
        // Predicated region
        $region57: #{tpu_custom_call.1} parent=55 // pred_check
          %p366 = pneg %p45
        $region58: #{tpu_custom_call.1} parent=55 // pred_check_branch
          %368 = sbr.rel (%p366) target = $region60
        $region59: #{tpu_custom_call.1} parent=55 // pred_region
          %s369 = sand.u32 %s35, 1
          %s370 = scalar_lea.sflag [#allocation3], %s369
          %s371 = sand.u32 %s35, 1
          %s372 = smul.addr %s371, 52
          %s373 = scalar_lea.vmem [#allocation2], %s372
          %s374 = smul.u32 13, %s25
          %s376 = ssub.s32 832, 832
          %377 = vsyncadd %s370, %s376
          %s378 = smul.addr %s374, 64
          %s379 = scalar_lea.hbm %s0, %s378
          %s380 = sshll.u32 %s373, 4
          %s381 = int_to_ptr.vmem [resolvable:$true] %s380
          %386 = dma.hbm_to_vmem [thread:$0]  %s379, 832, %s381, %s370, 64, 64, 4
        $region60: #{tpu_custom_call.1} parent=55 // pred_fallthru
          _
      $region56: #{tpu_custom_call.1} parent=5 // pred_fallthru
        _
      %p387 = scmp.le.s32.totalorder 1, %s25
      %p388 = scmp.lt.s32.totalorder %s25, 3
      %p389 = pnand %p387, %p388
      %p390 = pneg %p389
      // Predicated region
      $region61: #{tpu_custom_call.1} parent=5 // pred_check
        _
      $region62: #{tpu_custom_call.1} parent=5 // pred_check_branch
        %392 = sbr.rel (%p389) target = $region64
      $region63: #{tpu_custom_call.1} parent=5 // pred_region
        %s393 = ssub.s32 %s25, 1
        %s394 = sand.u32 %s38, 1
        %s395 = scalar_lea.sflag [#allocation3], %s394
        %s396 = sand.u32 %s38, 1
        %s397 = smul.addr %s396, 52
        %s398 = scalar_lea.vmem [#allocation2], %s397
        // Predicated region
        $region65: #{tpu_custom_call.1} parent=63 // pred_check
          %p399 = pneg %p51
        $region66: #{tpu_custom_call.1} parent=63 // pred_check_branch
          %401 = sbr.rel (%p399) target = $region68
        $region67: #{tpu_custom_call.1} parent=63 // pred_region
          %402 = dma.done %s395, 832
        $region68: #{tpu_custom_call.1} parent=63 // pred_fallthru
          _
        // Predicated region
        $region69: #{tpu_custom_call.1} parent=63 // pred_check
          %p403 = pneg %p72
        $region70: #{tpu_custom_call.1} parent=63 // pred_check_branch
          %405 = sbr.rel (%p403) target = $region72
        $region71: #{tpu_custom_call.1} parent=63 // pred_region
          %406 = dma.done [#allocation6], 1024
        $region72: #{tpu_custom_call.1} parent=63 // pred_fallthru
          _
        // Predicated region
        $region73: #{tpu_custom_call.1} parent=63 // pred_check
          %p407 = pneg %p156
        $region74: #{tpu_custom_call.1} parent=63 // pred_check_branch
          %409 = sbr.rel (%p407) target = $region76
        $region75: #{tpu_custom_call.1} parent=63 // pred_region
          %410 = dma.done [#allocation6], 1024
        $region76: #{tpu_custom_call.1} parent=63 // pred_fallthru
          _
        // Predicated region
        $region77: #{tpu_custom_call.1} parent=63 // pred_check
          %p411 = pneg %p240
        $region78: #{tpu_custom_call.1} parent=63 // pred_check_branch
          %413 = sbr.rel (%p411) target = $region80
        $region79: #{tpu_custom_call.1} parent=63 // pred_region
          %414 = dma.done [#allocation9], 1024
        $region80: #{tpu_custom_call.1} parent=63 // pred_fallthru
          _
        %s415 = sand.u32 %s38, 1
        %s416 = scalar_lea.sflag [#allocation3], %s415
        %s417 = sand.u32 %s38, 1
        %s418 = smul.addr %s417, 52
        %s419 = scalar_lea.vmem [#allocation2], %s418
        %p420 = pneg %p51
        %p421 = pneg %p48
        %p422 = pneg %p72
        %p423 = pneg %p69
        %p424 = pneg %p93
        %p425 = pneg %p90
        %p426 = pneg %p114
        %p427 = pneg %p111
        %p428 = pneg %p135
        %p429 = pneg %p132
        %p430 = pneg %p156
        %p431 = pneg %p153
        %p432 = pneg %p177
        %p433 = pneg %p174
        %p434 = pneg %p198
        %p435 = pneg %p195
        %p436 = pneg %p219
        %p437 = pneg %p216
        %p438 = pneg %p240
        %p439 = pneg %p237
        %p440 = pneg %p261
        %p441 = pneg %p258
        %p442 = pneg %p287
        %p443 = pneg %p284
        %s444 = sand.u32 %s274, 1
        %s445 = scalar_lea.sflag [#allocation4], %s444
        %s446 = sand.u32 %s274, 1
        %s447 = smul.addr %s446, 104
        %s448 = scalar_lea.vmem [#allocation10], %s447
        %s449 = smul.u32 13, %s30
        %s450 = smul.u32 13, %s30
        %v452 = vld [vmem:[%s398] sm:$0xf]
        %v453 = vld [vmem:[%s398 + $0x4] sm:$0xf]
        %v454 = vld [vmem:[%s398 + $0x8] sm:$0xf]
        %v455 = vld [vmem:[%s398 + $0xc] sm:$0xf]
        %v456 = vld [vmem:[%s398 + $0x10] sm:$0xf]
        %v457 = vld [vmem:[%s398 + $0x14] sm:$0xf]
        %v458 = vld [vmem:[%s398 + $0x18] sm:$0xf]
        %v459 = vld [vmem:[%s398 + $0x1c] sm:$0xf]
        %v460 = vld [vmem:[%s398 + $0x20] sm:$0xf]
        %v461 = vld [vmem:[%s398 + $0x24] sm:$0xf]
        %v462 = vld [vmem:[%s398 + $0x28] sm:$0xf]
        %v463 = vld [vmem:[%s398 + $0x2c] sm:$0xf]
        %v464 = vld [vmem:[%s398 + $0x30] sm:$0xf]
        %v465 = vld [vmem:[#allocation5] sm:$0xf]
        %v466 = vld [vmem:[#allocation5 + $0x4] sm:$0xf]
        %v467 = vld [vmem:[#allocation5 + $0x8] sm:$0xf]
        %v468 = vld [vmem:[#allocation5 + $0xc] sm:$0xf]
        %v469 = vld [vmem:[#allocation5 + $0x10] sm:$0xf]
        %v470 = vld [vmem:[#allocation5 + $0x14] sm:$0xf]
        %v471 = vld [vmem:[#allocation5 + $0x18] sm:$0xf]
        %v472 = vld [vmem:[#allocation5 + $0x1c] sm:$0xf]
        %v473 = vld [vmem:[#allocation5 + $0x20] sm:$0xf]
        %v474 = vld [vmem:[#allocation5 + $0x24] sm:$0xf]
        %v475 = vld [vmem:[#allocation5 + $0x28] sm:$0xf]
        %v476 = vld [vmem:[#allocation5 + $0x2c] sm:$0xf]
        %v477 = vld [vmem:[#allocation5 + $0x30] sm:$0xf]
        %v478 = vld [vmem:[#allocation5 + $0x34] sm:$0xf]
        %v479 = vld [vmem:[#allocation5 + $0x38] sm:$0xf]
        %v480 = vld [vmem:[#allocation5 + $0x3c] sm:$0xf]
        %v481 = vld [vmem:[%s2] sm:$0x1]
        %v483 = vlaneseq
        %v484 = vshrl.u32 %v483, 7
        %v485 = vsub.s32 0, %v484
        %v486 = vrot.slane %v481, %v485
        %v501 = vunpack.c.l.b16 %v452
        %v502 = vunpack.c.l.b16 %v453
        %v503 = vunpack.c.l.b16 %v454
        %v504 = vunpack.c.l.b16 %v455
        %v505 = vunpack.c.l.b16 %v456
        %v506 = vunpack.c.l.b16 %v457
        %v507 = vunpack.c.l.b16 %v458
        %v508 = vunpack.c.l.b16 %v459
        %v509 = vunpack.c.l.b16 %v460
        %v510 = vunpack.c.l.b16 %v461
        %v511 = vunpack.c.l.b16 %v462
        %v512 = vunpack.c.l.b16 %v463
        %v513 = vunpack.c.l.b16 %v464
        %v514 = vpack.c.b16 %v502, %v501
        %v515 = vpack.c.b16 %v504, %v503
        %v516 = vpack.c.b16 %v506, %v505
        %v517 = vpack.c.b16 %v508, %v507
        %v518 = vpack.c.b16 %v510, %v509
        %v519 = vpack.c.b16 %v512, %v511
        %v520 = vpack.c.b16 %v513, %v513
        %v544 = vunpack.c.l.b16 %v465
        %v545 = vunpack.c.l.b16 %v466
        %v546 = vunpack.c.l.b16 %v467
        %v547 = vunpack.c.l.b16 %v468
        %v548 = vunpack.c.l.b16 %v469
        %v549 = vunpack.c.l.b16 %v470
        %v550 = vunpack.c.l.b16 %v471
        %v551 = vunpack.c.l.b16 %v472
        %v552 = vunpack.c.l.b16 %v473
        %v553 = vunpack.c.l.b16 %v474
        %v554 = vunpack.c.l.b16 %v475
        %v555 = vunpack.c.l.b16 %v476
        %v556 = vunpack.c.l.b16 %v477
        %v557 = vunpack.c.l.b16 %v478
        %v558 = vunpack.c.l.b16 %v479
        %v559 = vunpack.c.l.b16 %v480
        %v560 = vpack.c.b16 %v545, %v544
        %v561 = vpack.c.b16 %v547, %v546
        %v562 = vpack.c.b16 %v549, %v548
        %v563 = vpack.c.b16 %v551, %v550
        %v564 = vpack.c.b16 %v553, %v552
        %v565 = vpack.c.b16 %v555, %v554
        %v566 = vpack.c.b16 %v557, %v556
        %v567 = vpack.c.b16 %v559, %v558
        %576 = vmatprep.subr.bf16.mxu0 0
        %577 = vmatpush1.bf16.msra.mxu0 %v560
        %578 = vmatprep.subr.bf16.mxu0 0
        %579 = vmatpush1.bf16.msra.mxu0 %v561
        %580 = vmatprep.subr.bf16.mxu0 0
        %581 = vmatpush1.bf16.msra.mxu0 %v562
        %582 = vmatprep.subr.bf16.mxu0 0
        %583 = vmatpush1.bf16.msra.mxu0 %v563
        %584 = vmatprep.subr.bf16.mxu0 0
        %585 = vmatpush1.bf16.msra.mxu0 %v564
        %586 = vmatprep.subr.bf16.mxu0 0
        %587 = vmatpush1.bf16.msra.mxu0 %v565
        %588 = vmatprep.subr.bf16.mxu0 0
        %589 = vmatpush1.bf16.msra.mxu0 %v566
        %590 = vmatprep.subr.bf16.mxu0 0
        %591 = vmatpush1.bf16.msra.mxu0 %v567
        %592 = vmatprep.subr.bf16.mxu0 0
        %593 = vmatpush1.bf16.msra.mxu0 0
        %594 = vmatprep.subr.bf16.mxu0 0
        %595 = vmatpush1.bf16.msra.mxu0 0
        %596 = vmatprep.subr.bf16.mxu0 0
        %597 = vmatpush1.bf16.msra.mxu0 0
        %598 = vmatprep.subr.bf16.mxu0 0
        %599 = vmatpush1.bf16.msra.mxu0 0
        %600 = vmatprep.subr.bf16.mxu0 0
        %601 = vmatpush1.bf16.msra.mxu0 0
        %602 = vmatprep.subr.bf16.mxu0 0
        %603 = vmatpush1.bf16.msra.mxu0 0
        %604 = vmatprep.subr.bf16.mxu0 0
        %605 = vmatpush1.bf16.msra.mxu0 0
        %606 = vmatprep.subr.bf16.mxu0 0
        %607 = vmatpush1.bf16.msra.mxu0 0
        %608 = vmatprep.mubr.bf16.mxu0 0
        %609 = vmatmul.mubr.bf16.gmra.mrb[0].mxu0 %v514
        %v610 = vpop.f32.mrb[0].mxu0
        %v611 = vadd.f32 %v486, %v610
        %v612 = vpop.f32.mrb[0].mxu0
        %v613 = vpop.f32.mrb[0].mxu0
        %v614 = vadd.f32 %v486, %v613
        %v615 = vpop.f32.mrb[0].mxu0
        %616 = vmatprep.mubr.bf16.mxu0 0
        %617 = vmatmul.mubr.bf16.gmra.mrb[0].mxu0 %v515
        %v618 = vpop.f32.mrb[0].mxu0
        %v619 = vadd.f32 %v486, %v618
        %v620 = vpop.f32.mrb[0].mxu0
        %v621 = vpop.f32.mrb[0].mxu0
        %v622 = vadd.f32 %v486, %v621
        %v623 = vpop.f32.mrb[0].mxu0
        %624 = vmatprep.mubr.bf16.mxu0 0
        %625 = vmatmul.mubr.bf16.gmra.mrb[0].mxu0 %v516
        %v626 = vpop.f32.mrb[0].mxu0
        %v627 = vadd.f32 %v486, %v626
        %v628 = vpop.f32.mrb[0].mxu0
        %v629 = vpop.f32.mrb[0].mxu0
        %v630 = vadd.f32 %v486, %v629
        %v631 = vpop.f32.mrb[0].mxu0
        %632 = vmatprep.mubr.bf16.mxu0 0
        %633 = vmatmul.mubr.bf16.gmra.mrb[0].mxu0 %v517
        %v634 = vpop.f32.mrb[0].mxu0
        %v635 = vadd.f32 %v486, %v634
        %v636 = vpop.f32.mrb[0].mxu0
        %v637 = vpop.f32.mrb[0].mxu0
        %v638 = vadd.f32 %v486, %v637
        %v639 = vpop.f32.mrb[0].mxu0
        %640 = vmatprep.mubr.bf16.mxu0 0
        %641 = vmatmul.mubr.bf16.gmra.mrb[0].mxu0 %v518
        %v642 = vpop.f32.mrb[0].mxu0
        %v643 = vadd.f32 %v486, %v642
        %v644 = vpop.f32.mrb[0].mxu0
        %v645 = vpop.f32.mrb[0].mxu0
        %v646 = vadd.f32 %v486, %v645
        %v647 = vpop.f32.mrb[0].mxu0
        %648 = vmatprep.mubr.bf16.mxu0 0
        %649 = vmatmul.mubr.bf16.gmra.mrb[0].mxu0 %v519
        %v650 = vpop.f32.mrb[0].mxu0
        %v651 = vadd.f32 %v486, %v650
        %v652 = vpop.f32.mrb[0].mxu0
        %v653 = vpop.f32.mrb[0].mxu0
        %v654 = vadd.f32 %v486, %v653
        %v655 = vpop.f32.mrb[0].mxu0
        %656 = vmatprep.mubr.bf16.mxu0 0
        %657 = vmatmul.mubr.bf16.gmra.mrb[0].mxu0 %v520
        %v658 = vpop.f32.mrb[0].mxu0
        %v659 = vadd.f32 %v486, %v658
        %v660 = vpop.f32.mrb[0].mxu0
        %v661 = vpop.f32.mrb[0].mxu0
        %v662 = vpop.f32.mrb[0].mxu0
        %663 = vdwg.mxu0
        %v664 = vmax.f32 %v611, 0.0
        %v665 = vmax.f32 %v614, 0.0
        %v666 = vmax.f32 %v619, 0.0
        %v667 = vmax.f32 %v622, 0.0
        %v668 = vmax.f32 %v627, 0.0
        %v669 = vmax.f32 %v630, 0.0
        %v670 = vmax.f32 %v635, 0.0
        %v671 = vmax.f32 %v638, 0.0
        %v672 = vmax.f32 %v643, 0.0
        %v673 = vmax.f32 %v646, 0.0
        %v674 = vmax.f32 %v651, 0.0
        %v675 = vmax.f32 %v654, 0.0
        %v676 = vmax.f32 %v659, 0.0
        %v677 = vld [vmem:[%s3] sm:$0x1]
        %v678 = vld [vmem:[%s4] sm:$0x1]
        %679 = vadd.xlane.f32.xlu0 %v664
        %v680 = vpop.xlane.xlu0 %679
        %681 = vadd.xlane.f32.xlu0 %v665
        %v682 = vpop.xlane.xlu0 %681
        %683 = vadd.xlane.f32.xlu0 %v666
        %v684 = vpop.xlane.xlu0 %683
        %685 = vadd.xlane.f32.xlu0 %v667
        %v686 = vpop.xlane.xlu0 %685
        %687 = vadd.xlane.f32.xlu0 %v668
        %v688 = vpop.xlane.xlu0 %687
        %689 = vadd.xlane.f32.xlu0 %v669
        %v690 = vpop.xlane.xlu0 %689
        %691 = vadd.xlane.f32.xlu0 %v670
        %v692 = vpop.xlane.xlu0 %691
        %693 = vadd.xlane.f32.xlu0 %v671
        %v694 = vpop.xlane.xlu0 %693
        %695 = vadd.xlane.f32.xlu0 %v672
        %v696 = vpop.xlane.xlu0 %695
        %697 = vadd.xlane.f32.xlu0 %v673
        %v698 = vpop.xlane.xlu0 %697
        %699 = vadd.xlane.f32.xlu0 %v674
        %v700 = vpop.xlane.xlu0 %699
        %701 = vadd.xlane.f32.xlu0 %v675
        %v702 = vpop.xlane.xlu0 %701
        %703 = vadd.xlane.f32.xlu0 %v676
        %v704 = vpop.xlane.xlu0 %703
        %v705 = vmul.f32 %v680, 0.015625
        %v706 = vmul.f32 %v682, 0.015625
        %v707 = vmul.f32 %v684, 0.015625
        %v708 = vmul.f32 %v686, 0.015625
        %v709 = vmul.f32 %v688, 0.015625
        %v710 = vmul.f32 %v690, 0.015625
        %v711 = vmul.f32 %v692, 0.015625
        %v712 = vmul.f32 %v694, 0.015625
        %v713 = vmul.f32 %v696, 0.015625
        %v714 = vmul.f32 %v698, 0.015625
        %v715 = vmul.f32 %v700, 0.015625
        %v716 = vmul.f32 %v702, 0.015625
        %v717 = vmul.f32 %v704, 0.015625
        %v718 = vsub.f32 %v664, %v705
        %v719 = vsub.f32 %v665, %v706
        %v720 = vsub.f32 %v666, %v707
        %v721 = vsub.f32 %v667, %v708
        %v722 = vsub.f32 %v668, %v709
        %v723 = vsub.f32 %v669, %v710
        %v724 = vsub.f32 %v670, %v711
        %v725 = vsub.f32 %v671, %v712
        %v726 = vsub.f32 %v672, %v713
        %v727 = vsub.f32 %v673, %v714
        %v728 = vsub.f32 %v674, %v715
        %v729 = vsub.f32 %v675, %v716
        %v730 = vsub.f32 %v676, %v717
        %v731 = vmul.f32 %v718, %v718
        %v732 = vmul.f32 %v719, %v719
        %v733 = vmul.f32 %v720, %v720
        %v734 = vmul.f32 %v721, %v721
        %v735 = vmul.f32 %v722, %v722
        %v736 = vmul.f32 %v723, %v723
        %v737 = vmul.f32 %v724, %v724
        %v738 = vmul.f32 %v725, %v725
        %v739 = vmul.f32 %v726, %v726
        %v740 = vmul.f32 %v727, %v727
        %v741 = vmul.f32 %v728, %v728
        %v742 = vmul.f32 %v729, %v729
        %v743 = vmul.f32 %v730, %v730
        %744 = vadd.xlane.f32.xlu0 %v731
        %v745 = vpop.xlane.xlu0 %744
        %746 = vadd.xlane.f32.xlu0 %v732
        %v747 = vpop.xlane.xlu0 %746
        %748 = vadd.xlane.f32.xlu0 %v733
        %v749 = vpop.xlane.xlu0 %748
        %750 = vadd.xlane.f32.xlu0 %v734
        %v751 = vpop.xlane.xlu0 %750
        %752 = vadd.xlane.f32.xlu0 %v735
        %v753 = vpop.xlane.xlu0 %752
        %754 = vadd.xlane.f32.xlu0 %v736
        %v755 = vpop.xlane.xlu0 %754
        %756 = vadd.xlane.f32.xlu0 %v737
        %v757 = vpop.xlane.xlu0 %756
        %758 = vadd.xlane.f32.xlu0 %v738
        %v759 = vpop.xlane.xlu0 %758
        %760 = vadd.xlane.f32.xlu0 %v739
        %v761 = vpop.xlane.xlu0 %760
        %762 = vadd.xlane.f32.xlu0 %v740
        %v763 = vpop.xlane.xlu0 %762
        %764 = vadd.xlane.f32.xlu0 %v741
        %v765 = vpop.xlane.xlu0 %764
        %766 = vadd.xlane.f32.xlu0 %v742
        %v767 = vpop.xlane.xlu0 %766
        %768 = vadd.xlane.f32.xlu0 %v743
        %v769 = vpop.xlane.xlu0 %768
        %v770 = vmul.f32 %v705, %v705
        %v771 = vmul.f32 %v706, %v706
        %v772 = vmul.f32 %v707, %v707
        %v773 = vmul.f32 %v708, %v708
        %v774 = vmul.f32 %v709, %v709
        %v775 = vmul.f32 %v710, %v710
        %v776 = vmul.f32 %v711, %v711
        %v777 = vmul.f32 %v712, %v712
        %v778 = vmul.f32 %v713, %v713
        %v779 = vmul.f32 %v714, %v714
        %v780 = vmul.f32 %v715, %v715
        %v781 = vmul.f32 %v716, %v716
        %v782 = vmul.f32 %v717, %v717
        %v783 = vmul.f32 %v770, 64.0
        %v784 = vmul.f32 %v771, 64.0
        %v785 = vmul.f32 %v772, 64.0
        %v786 = vmul.f32 %v773, 64.0
        %v787 = vmul.f32 %v774, 64.0
        %v788 = vmul.f32 %v775, 64.0
        %v789 = vmul.f32 %v776, 64.0
        %v790 = vmul.f32 %v777, 64.0
        %v791 = vmul.f32 %v778, 64.0
        %v792 = vmul.f32 %v779, 64.0
        %v793 = vmul.f32 %v780, 64.0
        %v794 = vmul.f32 %v781, 64.0
        %v795 = vmul.f32 %v782, 64.0
        %v796 = vsub.f32 %v745, %v783
        %v797 = vsub.f32 %v747, %v784
        %v798 = vsub.f32 %v749, %v785
        %v799 = vsub.f32 %v751, %v786
        %v800 = vsub.f32 %v753, %v787
        %v801 = vsub.f32 %v755, %v788
        %v802 = vsub.f32 %v757, %v789
        %v803 = vsub.f32 %v759, %v790
        %v804 = vsub.f32 %v761, %v791
        %v805 = vsub.f32 %v763, %v792
        %v806 = vsub.f32 %v765, %v793
        %v807 = vsub.f32 %v767, %v794
        %v808 = vsub.f32 %v769, %v795
        %v809 = vmul.f32 %v796, 0.015625
        %v810 = vmul.f32 %v797, 0.015625
        %v811 = vmul.f32 %v798, 0.015625
        %v812 = vmul.f32 %v799, 0.015625
        %v813 = vmul.f32 %v800, 0.015625
        %v814 = vmul.f32 %v801, 0.015625
        %v815 = vmul.f32 %v802, 0.015625
        %v816 = vmul.f32 %v803, 0.015625
        %v817 = vmul.f32 %v804, 0.015625
        %v818 = vmul.f32 %v805, 0.015625
        %v819 = vmul.f32 %v806, 0.015625
        %v820 = vmul.f32 %v807, 0.015625
        %v821 = vmul.f32 %v808, 0.015625
        %v822 = vmax.f32 %v809, 0.0
        %v823 = vmax.f32 %v810, 0.0
        %v824 = vmax.f32 %v811, 0.0
        %v825 = vmax.f32 %v812, 0.0
        %v826 = vmax.f32 %v813, 0.0
        %v827 = vmax.f32 %v814, 0.0
        %v828 = vmax.f32 %v815, 0.0
        %v829 = vmax.f32 %v816, 0.0
        %v830 = vmax.f32 %v817, 0.0
        %v831 = vmax.f32 %v818, 0.0
        %v832 = vmax.f32 %v819, 0.0
        %v833 = vmax.f32 %v820, 0.0
        %v834 = vmax.f32 %v821, 0.0
        %v835 = vadd.f32 %v822, 1e-05
        %v836 = vadd.f32 %v823, 1e-05
        %v837 = vadd.f32 %v824, 1e-05
        %v838 = vadd.f32 %v825, 1e-05
        %v839 = vadd.f32 %v826, 1e-05
        %v840 = vadd.f32 %v827, 1e-05
        %v841 = vadd.f32 %v828, 1e-05
        %v842 = vadd.f32 %v829, 1e-05
        %v843 = vadd.f32 %v830, 1e-05
        %v844 = vadd.f32 %v831, 1e-05
        %v845 = vadd.f32 %v832, 1e-05
        %v846 = vadd.f32 %v833, 1e-05
        %v847 = vadd.f32 %v834, 1e-05
        %v848 = vrsqrt.pop %v835
        %v849 = vrsqrt.pop %v836
        %v850 = vrsqrt.pop %v837
        %v851 = vrsqrt.pop %v838
        %v852 = vrsqrt.pop %v839
        %v853 = vrsqrt.pop %v840
        %v854 = vrsqrt.pop %v841
        %v855 = vrsqrt.pop %v842
        %v856 = vrsqrt.pop %v843
        %v857 = vrsqrt.pop %v844
        %v858 = vrsqrt.pop %v845
        %v859 = vrsqrt.pop %v846
        %v860 = vrsqrt.pop %v847
        %v861 = vmul.f32 %v718, %v848
        %v862 = vmul.f32 %v719, %v849
        %v863 = vmul.f32 %v720, %v850
        %v864 = vmul.f32 %v721, %v851
        %v865 = vmul.f32 %v722, %v852
        %v866 = vmul.f32 %v723, %v853
        %v867 = vmul.f32 %v724, %v854
        %v868 = vmul.f32 %v725, %v855
        %v869 = vmul.f32 %v726, %v856
        %v870 = vmul.f32 %v727, %v857
        %v871 = vmul.f32 %v728, %v858
        %v872 = vmul.f32 %v729, %v859
        %v873 = vmul.f32 %v730, %v860
        %v875 = vlaneseq
        %v876 = vshrl.u32 %v875, 7
        %v877 = vsub.s32 0, %v876
        %v878 = vrot.slane %v677, %v877
        %v880 = vmul.f32 %v861, %v878
        %v881 = vmul.f32 %v862, %v878
        %v882 = vmul.f32 %v863, %v878
        %v883 = vmul.f32 %v864, %v878
        %v884 = vmul.f32 %v865, %v878
        %v885 = vmul.f32 %v866, %v878
        %v886 = vmul.f32 %v867, %v878
        %v887 = vmul.f32 %v868, %v878
        %v888 = vmul.f32 %v869, %v878
        %v889 = vmul.f32 %v870, %v878
        %v890 = vmul.f32 %v871, %v878
        %v891 = vmul.f32 %v872, %v878
        %v892 = vmul.f32 %v873, %v878
        %v894 = vlaneseq
        %v895 = vshrl.u32 %v894, 7
        %v896 = vsub.s32 0, %v895
        %v897 = vrot.slane %v678, %v896
        %v899 = vadd.f32 %v880, %v897
        %v900 = vadd.f32 %v881, %v897
        %v901 = vadd.f32 %v882, %v897
        %v902 = vadd.f32 %v883, %v897
        %v903 = vadd.f32 %v884, %v897
        %v904 = vadd.f32 %v885, %v897
        %v905 = vadd.f32 %v886, %v897
        %v906 = vadd.f32 %v887, %v897
        %v907 = vadd.f32 %v888, %v897
        %v908 = vadd.f32 %v889, %v897
        %v909 = vadd.f32 %v890, %v897
        %v910 = vadd.f32 %v891, %v897
        %v911 = vadd.f32 %v892, %v897
        %v912 = vpack.c.bf16 %v900, %v899
        %v913 = vpack.c.bf16 %v902, %v901
        %v914 = vpack.c.bf16 %v904, %v903
        %v915 = vpack.c.bf16 %v906, %v905
        %v916 = vpack.c.bf16 %v908, %v907
        %v917 = vpack.c.bf16 %v910, %v909
        %v918 = vpack.c.bf16 %v911, %v911
        %v919 = vld [vmem:[#allocation7] sm:$0xf]
        %v920 = vld [vmem:[#allocation7 + $0x4] sm:$0xf]
        %v921 = vld [vmem:[#allocation7 + $0x8] sm:$0xf]
        %v922 = vld [vmem:[#allocation7 + $0xc] sm:$0xf]
        %v923 = vld [vmem:[#allocation7 + $0x10] sm:$0xf]
        %v924 = vld [vmem:[#allocation7 + $0x14] sm:$0xf]
        %v925 = vld [vmem:[#allocation7 + $0x18] sm:$0xf]
        %v926 = vld [vmem:[#allocation7 + $0x1c] sm:$0xf]
        %v927 = vld [vmem:[#allocation7 + $0x20] sm:$0xf]
        %v928 = vld [vmem:[#allocation7 + $0x24] sm:$0xf]
        %v929 = vld [vmem:[#allocation7 + $0x28] sm:$0xf]
        %v930 = vld [vmem:[#allocation7 + $0x2c] sm:$0xf]
        %v931 = vld [vmem:[#allocation7 + $0x30] sm:$0xf]
        %v932 = vld [vmem:[#allocation7 + $0x34] sm:$0xf]
        %v933 = vld [vmem:[#allocation7 + $0x38] sm:$0xf]
        %v934 = vld [vmem:[#allocation7 + $0x3c] sm:$0xf]
        %v935 = vld [vmem:[%s6] sm:$0x1]
        %v937 = vlaneseq
        %v938 = vshrl.u32 %v937, 7
        %v939 = vsub.s32 0, %v938
        %v940 = vrot.slane %v935, %v939
        %v958 = vunpack.c.l.b16 %v919
        %v959 = vunpack.c.l.b16 %v920
        %v960 = vunpack.c.l.b16 %v921
        %v961 = vunpack.c.l.b16 %v922
        %v962 = vunpack.c.l.b16 %v923
        %v963 = vunpack.c.l.b16 %v924
        %v964 = vunpack.c.l.b16 %v925
        %v965 = vunpack.c.l.b16 %v926
        %v966 = vunpack.c.l.b16 %v927
        %v967 = vunpack.c.l.b16 %v928
        %v968 = vunpack.c.l.b16 %v929
        %v969 = vunpack.c.l.b16 %v930
        %v970 = vunpack.c.l.b16 %v931
        %v971 = vunpack.c.l.b16 %v932
        %v972 = vunpack.c.l.b16 %v933
        %v973 = vunpack.c.l.b16 %v934
        %v974 = vpack.c.b16 %v959, %v958
        %v975 = vpack.c.b16 %v961, %v960
        %v976 = vpack.c.b16 %v963, %v962
        %v977 = vpack.c.b16 %v965, %v964
        %v978 = vpack.c.b16 %v967, %v966
        %v979 = vpack.c.b16 %v969, %v968
        %v980 = vpack.c.b16 %v971, %v970
        %v981 = vpack.c.b16 %v973, %v972
        %990 = vmatprep.subr.bf16.mxu0 0
        %991 = vmatpush1.bf16.msra.mxu0 %v974
        %992 = vmatprep.subr.bf16.mxu0 0
        %993 = vmatpush1.bf16.msra.mxu0 %v975
        %994 = vmatprep.subr.bf16.mxu0 0
        %995 = vmatpush1.bf16.msra.mxu0 %v976
        %996 = vmatprep.subr.bf16.mxu0 0
        %997 = vmatpush1.bf16.msra.mxu0 %v977
        %998 = vmatprep.subr.bf16.mxu0 0
        %999 = vmatpush1.bf16.msra.mxu0 %v978
        %1000 = vmatprep.subr.bf16.mxu0 0
        %1001 = vmatpush1.bf16.msra.mxu0 %v979
        %1002 = vmatprep.subr.bf16.mxu0 0
        %1003 = vmatpush1.bf16.msra.mxu0 %v980
        %1004 = vmatprep.subr.bf16.mxu0 0
        %1005 = vmatpush1.bf16.msra.mxu0 %v981
        %1006 = vmatprep.subr.bf16.mxu0 0
        %1007 = vmatpush1.bf16.msra.mxu0 0
        %1008 = vmatprep.subr.bf16.mxu0 0
        %1009 = vmatpush1.bf16.msra.mxu0 0
        %1010 = vmatprep.subr.bf16.mxu0 0
        %1011 = vmatpush1.bf16.msra.mxu0 0
        %1012 = vmatprep.subr.bf16.mxu0 0
        %1013 = vmatpush1.bf16.msra.mxu0 0
        %1014 = vmatprep.subr.bf16.mxu0 0
        %1015 = vmatpush1.bf16.msra.mxu0 0
        %1016 = vmatprep.subr.bf16.mxu0 0
        %1017 = vmatpush1.bf16.msra.mxu0 0
        %1018 = vmatprep.subr.bf16.mxu0 0
        %1019 = vmatpush1.bf16.msra.mxu0 0
        %1020 = vmatprep.subr.bf16.mxu0 0
        %1021 = vmatpush1.bf16.msra.mxu0 0
        %1022 = vmatprep.mubr.bf16.mxu0 0
        %1023 = vmatmul.mubr.bf16.gmra.mrb[0].mxu0 %v912
        %v1024 = vpop.f32.mrb[0].mxu0
        %v1025 = vadd.f32 %v940, %v1024
        %v1026 = vpop.f32.mrb[0].mxu0
        %v1027 = vpop.f32.mrb[0].mxu0
        %v1028 = vadd.f32 %v940, %v1027
        %v1029 = vpop.f32.mrb[0].mxu0
        %1030 = vmatprep.mubr.bf16.mxu0 0
        %1031 = vmatmul.mubr.bf16.gmra.mrb[0].mxu0 %v913
        %v1032 = vpop.f32.mrb[0].mxu0
        %v1033 = vadd.f32 %v940, %v1032
        %v1034 = vpop.f32.mrb[0].mxu0
        %v1035 = vpop.f32.mrb[0].mxu0
        %v1036 = vadd.f32 %v940, %v1035
        %v1037 = vpop.f32.mrb[0].mxu0
        %1038 = vmatprep.mubr.bf16.mxu0 0
        %1039 = vmatmul.mubr.bf16.gmra.mrb[0].mxu0 %v914
        %v1040 = vpop.f32.mrb[0].mxu0
        %v1041 = vadd.f32 %v940, %v1040
        %v1042 = vpop.f32.mrb[0].mxu0
        %v1043 = vpop.f32.mrb[0].mxu0
        %v1044 = vadd.f32 %v940, %v1043
        %v1045 = vpop.f32.mrb[0].mxu0
        %1046 = vmatprep.mubr.bf16.mxu0 0
        %1047 = vmatmul.mubr.bf16.gmra.mrb[0].mxu0 %v915
        %v1048 = vpop.f32.mrb[0].mxu0
        %v1049 = vadd.f32 %v940, %v1048
        %v1050 = vpop.f32.mrb[0].mxu0
        %v1051 = vpop.f32.mrb[0].mxu0
        %v1052 = vadd.f32 %v940, %v1051
        %v1053 = vpop.f32.mrb[0].mxu0
        %1054 = vmatprep.mubr.bf16.mxu0 0
        %1055 = vmatmul.mubr.bf16.gmra.mrb[0].mxu0 %v916
        %v1056 = vpop.f32.mrb[0].mxu0
        %v1057 = vadd.f32 %v940, %v1056
        %v1058 = vpop.f32.mrb[0].mxu0
        %v1059 = vpop.f32.mrb[0].mxu0
        %v1060 = vadd.f32 %v940, %v1059
        %v1061 = vpop.f32.mrb[0].mxu0
        %1062 = vmatprep.mubr.bf16.mxu0 0
        %1063 = vmatmul.mubr.bf16.gmra.mrb[0].mxu0 %v917
        %v1064 = vpop.f32.mrb[0].mxu0
        %v1065 = vadd.f32 %v940, %v1064
        %v1066 = vpop.f32.mrb[0].mxu0
        %v1067 = vpop.f32.mrb[0].mxu0
        %v1068 = vadd.f32 %v940, %v1067
        %v1069 = vpop.f32.mrb[0].mxu0
        %1070 = vmatprep.mubr.bf16.mxu0 0
        %1071 = vmatmul.mubr.bf16.gmra.mrb[0].mxu0 %v918
        %v1072 = vpop.f32.mrb[0].mxu0
        %v1073 = vadd.f32 %v940, %v1072
        %v1074 = vpop.f32.mrb[0].mxu0
        %v1075 = vpop.f32.mrb[0].mxu0
        %v1076 = vpop.f32.mrb[0].mxu0
        %1077 = vdwg.mxu0
        %v1078 = vmax.f32 %v1025, 0.0
        %v1079 = vmax.f32 %v1028, 0.0
        %v1080 = vmax.f32 %v1033, 0.0
        %v1081 = vmax.f32 %v1036, 0.0
        %v1082 = vmax.f32 %v1041, 0.0
        %v1083 = vmax.f32 %v1044, 0.0
        %v1084 = vmax.f32 %v1049, 0.0
        %v1085 = vmax.f32 %v1052, 0.0
        %v1086 = vmax.f32 %v1057, 0.0
        %v1087 = vmax.f32 %v1060, 0.0
        %v1088 = vmax.f32 %v1065, 0.0
        %v1089 = vmax.f32 %v1068, 0.0
        %v1090 = vmax.f32 %v1073, 0.0
        %v1091 = vld [vmem:[%s7] sm:$0x1]
        %v1092 = vld [vmem:[%s8] sm:$0x1]
        %1093 = vadd.xlane.f32.xlu0 %v1078
        %v1094 = vpop.xlane.xlu0 %1093
        %1095 = vadd.xlane.f32.xlu0 %v1079
        %v1096 = vpop.xlane.xlu0 %1095
        %1097 = vadd.xlane.f32.xlu0 %v1080
        %v1098 = vpop.xlane.xlu0 %1097
        %1099 = vadd.xlane.f32.xlu0 %v1081
        %v1100 = vpop.xlane.xlu0 %1099
        %1101 = vadd.xlane.f32.xlu0 %v1082
        %v1102 = vpop.xlane.xlu0 %1101
        %1103 = vadd.xlane.f32.xlu0 %v1083
        %v1104 = vpop.xlane.xlu0 %1103
        %1105 = vadd.xlane.f32.xlu0 %v1084
        %v1106 = vpop.xlane.xlu0 %1105
        %1107 = vadd.xlane.f32.xlu0 %v1085
        %v1108 = vpop.xlane.xlu0 %1107
        %1109 = vadd.xlane.f32.xlu0 %v1086
        %v1110 = vpop.xlane.xlu0 %1109
        %1111 = vadd.xlane.f32.xlu0 %v1087
        %v1112 = vpop.xlane.xlu0 %1111
        %1113 = vadd.xlane.f32.xlu0 %v1088
        %v1114 = vpop.xlane.xlu0 %1113
        %1115 = vadd.xlane.f32.xlu0 %v1089
        %v1116 = vpop.xlane.xlu0 %1115
        %1117 = vadd.xlane.f32.xlu0 %v1090
        %v1118 = vpop.xlane.xlu0 %1117
        %v1119 = vmul.f32 %v1094, 0.015625
        %v1120 = vmul.f32 %v1096, 0.015625
        %v1121 = vmul.f32 %v1098, 0.015625
        %v1122 = vmul.f32 %v1100, 0.015625
        %v1123 = vmul.f32 %v1102, 0.015625
        %v1124 = vmul.f32 %v1104, 0.015625
        %v1125 = vmul.f32 %v1106, 0.015625
        %v1126 = vmul.f32 %v1108, 0.015625
        %v1127 = vmul.f32 %v1110, 0.015625
        %v1128 = vmul.f32 %v1112, 0.015625
        %v1129 = vmul.f32 %v1114, 0.015625
        %v1130 = vmul.f32 %v1116, 0.015625
        %v1131 = vmul.f32 %v1118, 0.015625
        %v1132 = vsub.f32 %v1078, %v1119
        %v1133 = vsub.f32 %v1079, %v1120
        %v1134 = vsub.f32 %v1080, %v1121
        %v1135 = vsub.f32 %v1081, %v1122
        %v1136 = vsub.f32 %v1082, %v1123
        %v1137 = vsub.f32 %v1083, %v1124
        %v1138 = vsub.f32 %v1084, %v1125
        %v1139 = vsub.f32 %v1085, %v1126
        %v1140 = vsub.f32 %v1086, %v1127
        %v1141 = vsub.f32 %v1087, %v1128
        %v1142 = vsub.f32 %v1088, %v1129
        %v1143 = vsub.f32 %v1089, %v1130
        %v1144 = vsub.f32 %v1090, %v1131
        %v1145 = vmul.f32 %v1132, %v1132
        %v1146 = vmul.f32 %v1133, %v1133
        %v1147 = vmul.f32 %v1134, %v1134
        %v1148 = vmul.f32 %v1135, %v1135
        %v1149 = vmul.f32 %v1136, %v1136
        %v1150 = vmul.f32 %v1137, %v1137
        %v1151 = vmul.f32 %v1138, %v1138
        %v1152 = vmul.f32 %v1139, %v1139
        %v1153 = vmul.f32 %v1140, %v1140
        %v1154 = vmul.f32 %v1141, %v1141
        %v1155 = vmul.f32 %v1142, %v1142
        %v1156 = vmul.f32 %v1143, %v1143
        %v1157 = vmul.f32 %v1144, %v1144
        %1158 = vadd.xlane.f32.xlu0 %v1145
        %v1159 = vpop.xlane.xlu0 %1158
        %1160 = vadd.xlane.f32.xlu0 %v1146
        %v1161 = vpop.xlane.xlu0 %1160
        %1162 = vadd.xlane.f32.xlu0 %v1147
        %v1163 = vpop.xlane.xlu0 %1162
        %1164 = vadd.xlane.f32.xlu0 %v1148
        %v1165 = vpop.xlane.xlu0 %1164
        %1166 = vadd.xlane.f32.xlu0 %v1149
        %v1167 = vpop.xlane.xlu0 %1166
        %1168 = vadd.xlane.f32.xlu0 %v1150
        %v1169 = vpop.xlane.xlu0 %1168
        %1170 = vadd.xlane.f32.xlu0 %v1151
        %v1171 = vpop.xlane.xlu0 %1170
        %1172 = vadd.xlane.f32.xlu0 %v1152
        %v1173 = vpop.xlane.xlu0 %1172
        %1174 = vadd.xlane.f32.xlu0 %v1153
        %v1175 = vpop.xlane.xlu0 %1174
        %1176 = vadd.xlane.f32.xlu0 %v1154
        %v1177 = vpop.xlane.xlu0 %1176
        %1178 = vadd.xlane.f32.xlu0 %v1155
        %v1179 = vpop.xlane.xlu0 %1178
        %1180 = vadd.xlane.f32.xlu0 %v1156
        %v1181 = vpop.xlane.xlu0 %1180
        %1182 = vadd.xlane.f32.xlu0 %v1157
        %v1183 = vpop.xlane.xlu0 %1182
        %v1184 = vmul.f32 %v1119, %v1119
        %v1185 = vmul.f32 %v1120, %v1120
        %v1186 = vmul.f32 %v1121, %v1121
        %v1187 = vmul.f32 %v1122, %v1122
        %v1188 = vmul.f32 %v1123, %v1123
        %v1189 = vmul.f32 %v1124, %v1124
        %v1190 = vmul.f32 %v1125, %v1125
        %v1191 = vmul.f32 %v1126, %v1126
        %v1192 = vmul.f32 %v1127, %v1127
        %v1193 = vmul.f32 %v1128, %v1128
        %v1194 = vmul.f32 %v1129, %v1129
        %v1195 = vmul.f32 %v1130, %v1130
        %v1196 = vmul.f32 %v1131, %v1131
        %v1197 = vmul.f32 %v1184, 64.0
        %v1198 = vmul.f32 %v1185, 64.0
        %v1199 = vmul.f32 %v1186, 64.0
        %v1200 = vmul.f32 %v1187, 64.0
        %v1201 = vmul.f32 %v1188, 64.0
        %v1202 = vmul.f32 %v1189, 64.0
        %v1203 = vmul.f32 %v1190, 64.0
        %v1204 = vmul.f32 %v1191, 64.0
        %v1205 = vmul.f32 %v1192, 64.0
        %v1206 = vmul.f32 %v1193, 64.0
        %v1207 = vmul.f32 %v1194, 64.0
        %v1208 = vmul.f32 %v1195, 64.0
        %v1209 = vmul.f32 %v1196, 64.0
        %v1210 = vsub.f32 %v1159, %v1197
        %v1211 = vsub.f32 %v1161, %v1198
        %v1212 = vsub.f32 %v1163, %v1199
        %v1213 = vsub.f32 %v1165, %v1200
        %v1214 = vsub.f32 %v1167, %v1201
        %v1215 = vsub.f32 %v1169, %v1202
        %v1216 = vsub.f32 %v1171, %v1203
        %v1217 = vsub.f32 %v1173, %v1204
        %v1218 = vsub.f32 %v1175, %v1205
        %v1219 = vsub.f32 %v1177, %v1206
        %v1220 = vsub.f32 %v1179, %v1207
        %v1221 = vsub.f32 %v1181, %v1208
        %v1222 = vsub.f32 %v1183, %v1209
        %v1223 = vmul.f32 %v1210, 0.015625
        %v1224 = vmul.f32 %v1211, 0.015625
        %v1225 = vmul.f32 %v1212, 0.015625
        %v1226 = vmul.f32 %v1213, 0.015625
        %v1227 = vmul.f32 %v1214, 0.015625
        %v1228 = vmul.f32 %v1215, 0.015625
        %v1229 = vmul.f32 %v1216, 0.015625
        %v1230 = vmul.f32 %v1217, 0.015625
        %v1231 = vmul.f32 %v1218, 0.015625
        %v1232 = vmul.f32 %v1219, 0.015625
        %v1233 = vmul.f32 %v1220, 0.015625
        %v1234 = vmul.f32 %v1221, 0.015625
        %v1235 = vmul.f32 %v1222, 0.015625
        %v1236 = vmax.f32 %v1223, 0.0
        %v1237 = vmax.f32 %v1224, 0.0
        %v1238 = vmax.f32 %v1225, 0.0
        %v1239 = vmax.f32 %v1226, 0.0
        %v1240 = vmax.f32 %v1227, 0.0
        %v1241 = vmax.f32 %v1228, 0.0
        %v1242 = vmax.f32 %v1229, 0.0
        %v1243 = vmax.f32 %v1230, 0.0
        %v1244 = vmax.f32 %v1231, 0.0
        %v1245 = vmax.f32 %v1232, 0.0
        %v1246 = vmax.f32 %v1233, 0.0
        %v1247 = vmax.f32 %v1234, 0.0
        %v1248 = vmax.f32 %v1235, 0.0
        %v1249 = vadd.f32 %v1236, 1e-05
        %v1250 = vadd.f32 %v1237, 1e-05
        %v1251 = vadd.f32 %v1238, 1e-05
        %v1252 = vadd.f32 %v1239, 1e-05
        %v1253 = vadd.f32 %v1240, 1e-05
        %v1254 = vadd.f32 %v1241, 1e-05
        %v1255 = vadd.f32 %v1242, 1e-05
        %v1256 = vadd.f32 %v1243, 1e-05
        %v1257 = vadd.f32 %v1244, 1e-05
        %v1258 = vadd.f32 %v1245, 1e-05
        %v1259 = vadd.f32 %v1246, 1e-05
        %v1260 = vadd.f32 %v1247, 1e-05
        %v1261 = vadd.f32 %v1248, 1e-05
        %v1262 = vrsqrt.pop %v1249
        %v1263 = vrsqrt.pop %v1250
        %v1264 = vrsqrt.pop %v1251
        %v1265 = vrsqrt.pop %v1252
        %v1266 = vrsqrt.pop %v1253
        %v1267 = vrsqrt.pop %v1254
        %v1268 = vrsqrt.pop %v1255
        %v1269 = vrsqrt.pop %v1256
        %v1270 = vrsqrt.pop %v1257
        %v1271 = vrsqrt.pop %v1258
        %v1272 = vrsqrt.pop %v1259
        %v1273 = vrsqrt.pop %v1260
        %v1274 = vrsqrt.pop %v1261
        %v1275 = vmul.f32 %v1132, %v1262
        %v1276 = vmul.f32 %v1133, %v1263
        %v1277 = vmul.f32 %v1134, %v1264
        %v1278 = vmul.f32 %v1135, %v1265
        %v1279 = vmul.f32 %v1136, %v1266
        %v1280 = vmul.f32 %v1137, %v1267
        %v1281 = vmul.f32 %v1138, %v1268
        %v1282 = vmul.f32 %v1139, %v1269
        %v1283 = vmul.f32 %v1140, %v1270
        %v1284 = vmul.f32 %v1141, %v1271
        %v1285 = vmul.f32 %v1142, %v1272
        %v1286 = vmul.f32 %v1143, %v1273
        %v1287 = vmul.f32 %v1144, %v1274
        %v1289 = vlaneseq
        %v1290 = vshrl.u32 %v1289, 7
        %v1291 = vsub.s32 0, %v1290
        %v1292 = vrot.slane %v1091, %v1291
        %v1294 = vmul.f32 %v1275, %v1292
        %v1295 = vmul.f32 %v1276, %v1292
        %v1296 = vmul.f32 %v1277, %v1292
        %v1297 = vmul.f32 %v1278, %v1292
        %v1298 = vmul.f32 %v1279, %v1292
        %v1299 = vmul.f32 %v1280, %v1292
        %v1300 = vmul.f32 %v1281, %v1292
        %v1301 = vmul.f32 %v1282, %v1292
        %v1302 = vmul.f32 %v1283, %v1292
        %v1303 = vmul.f32 %v1284, %v1292
        %v1304 = vmul.f32 %v1285, %v1292
        %v1305 = vmul.f32 %v1286, %v1292
        %v1306 = vmul.f32 %v1287, %v1292
        %v1308 = vlaneseq
        %v1309 = vshrl.u32 %v1308, 7
        %v1310 = vsub.s32 0, %v1309
        %v1311 = vrot.slane %v1092, %v1310
        %v1313 = vadd.f32 %v1294, %v1311
        %v1314 = vadd.f32 %v1295, %v1311
        %v1315 = vadd.f32 %v1296, %v1311
        %v1316 = vadd.f32 %v1297, %v1311
        %v1317 = vadd.f32 %v1298, %v1311
        %v1318 = vadd.f32 %v1299, %v1311
        %v1319 = vadd.f32 %v1300, %v1311
        %v1320 = vadd.f32 %v1301, %v1311
        %v1321 = vadd.f32 %v1302, %v1311
        %v1322 = vadd.f32 %v1303, %v1311
        %v1323 = vadd.f32 %v1304, %v1311
        %v1324 = vadd.f32 %v1305, %v1311
        %v1325 = vadd.f32 %v1306, %v1311
        %v1326 = vpack.c.bf16 %v1314, %v1313
        %v1327 = vpack.c.bf16 %v1316, %v1315
        %v1328 = vpack.c.bf16 %v1318, %v1317
        %v1329 = vpack.c.bf16 %v1320, %v1319
        %v1330 = vpack.c.bf16 %v1322, %v1321
        %v1331 = vpack.c.bf16 %v1324, %v1323
        %v1332 = vpack.c.bf16 %v1325, %v1325
        %v1333 = vld [vmem:[#allocation8] sm:$0xf]
        %v1334 = vld [vmem:[#allocation8 + $0x4] sm:$0xf]
        %v1335 = vld [vmem:[#allocation8 + $0x8] sm:$0xf]
        %v1336 = vld [vmem:[#allocation8 + $0xc] sm:$0xf]
        %v1337 = vld [vmem:[#allocation8 + $0x10] sm:$0xf]
        %v1338 = vld [vmem:[#allocation8 + $0x14] sm:$0xf]
        %v1339 = vld [vmem:[#allocation8 + $0x18] sm:$0xf]
        %v1340 = vld [vmem:[#allocation8 + $0x1c] sm:$0xf]
        %v1341 = vld [vmem:[#allocation8 + $0x20] sm:$0xf]
        %v1342 = vld [vmem:[#allocation8 + $0x24] sm:$0xf]
        %v1343 = vld [vmem:[#allocation8 + $0x28] sm:$0xf]
        %v1344 = vld [vmem:[#allocation8 + $0x2c] sm:$0xf]
        %v1345 = vld [vmem:[#allocation8 + $0x30] sm:$0xf]
        %v1346 = vld [vmem:[#allocation8 + $0x34] sm:$0xf]
        %v1347 = vld [vmem:[#allocation8 + $0x38] sm:$0xf]
        %v1348 = vld [vmem:[#allocation8 + $0x3c] sm:$0xf]
        %v1349 = vld [vmem:[%s10] sm:$0x1]
        %v1351 = vlaneseq
        %v1352 = vshrl.u32 %v1351, 7
        %v1353 = vsub.s32 0, %v1352
        %v1354 = vrot.slane %v1349, %v1353
        %v1372 = vunpack.c.l.b16 %v1333
        %v1373 = vunpack.c.l.b16 %v1334
        %v1374 = vunpack.c.l.b16 %v1335
        %v1375 = vunpack.c.l.b16 %v1336
        %v1376 = vunpack.c.l.b16 %v1337
        %v1377 = vunpack.c.l.b16 %v1338
        %v1378 = vunpack.c.l.b16 %v1339
        %v1379 = vunpack.c.l.b16 %v1340
        %v1380 = vunpack.c.l.b16 %v1341
        %v1381 = vunpack.c.l.b16 %v1342
        %v1382 = vunpack.c.l.b16 %v1343
        %v1383 = vunpack.c.l.b16 %v1344
        %v1384 = vunpack.c.l.b16 %v1345
        %v1385 = vunpack.c.l.b16 %v1346
        %v1386 = vunpack.c.l.b16 %v1347
        %v1387 = vunpack.c.l.b16 %v1348
        %v1388 = vpack.c.b16 %v1373, %v1372
        %v1389 = vpack.c.b16 %v1375, %v1374
        %v1390 = vpack.c.b16 %v1377, %v1376
        %v1391 = vpack.c.b16 %v1379, %v1378
        %v1392 = vpack.c.b16 %v1381, %v1380
        %v1393 = vpack.c.b16 %v1383, %v1382
        %v1394 = vpack.c.b16 %v1385, %v1384
        %v1395 = vpack.c.b16 %v1387, %v1386
        %1404 = vmatprep.subr.bf16.mxu0 0
        %1405 = vmatpush1.bf16.msra.mxu0 %v1388
        %1406 = vmatprep.subr.bf16.mxu0 0
        %1407 = vmatpush1.bf16.msra.mxu0 %v1389
        %1408 = vmatprep.subr.bf16.mxu0 0
        %1409 = vmatpush1.bf16.msra.mxu0 %v1390
        %1410 = vmatprep.subr.bf16.mxu0 0
        %1411 = vmatpush1.bf16.msra.mxu0 %v1391
        %1412 = vmatprep.subr.bf16.mxu0 0
        %1413 = vmatpush1.bf16.msra.mxu0 %v1392
        %1414 = vmatprep.subr.bf16.mxu0 0
        %1415 = vmatpush1.bf16.msra.mxu0 %v1393
        %1416 = vmatprep.subr.bf16.mxu0 0
        %1417 = vmatpush1.bf16.msra.mxu0 %v1394
        %1418 = vmatprep.subr.bf16.mxu0 0
        %1419 = vmatpush1.bf16.msra.mxu0 %v1395
        %1420 = vmatprep.subr.bf16.mxu0 0
        %1421 = vmatpush1.bf16.msra.mxu0 0
        %1422 = vmatprep.subr.bf16.mxu0 0
        %1423 = vmatpush1.bf16.msra.mxu0 0
        %1424 = vmatprep.subr.bf16.mxu0 0
        %1425 = vmatpush1.bf16.msra.mxu0 0
        %1426 = vmatprep.subr.bf16.mxu0 0
        %1427 = vmatpush1.bf16.msra.mxu0 0
        %1428 = vmatprep.subr.bf16.mxu0 0
        %1429 = vmatpush1.bf16.msra.mxu0 0
        %1430 = vmatprep.subr.bf16.mxu0 0
        %1431 = vmatpush1.bf16.msra.mxu0 0
        %1432 = vmatprep.subr.bf16.mxu0 0
        %1433 = vmatpush1.bf16.msra.mxu0 0
        %1434 = vmatprep.subr.bf16.mxu0 0
        %1435 = vmatpush1.bf16.msra.mxu0 0
        %1436 = vmatprep.mubr.bf16.mxu0 0
        %1437 = vmatmul.mubr.bf16.gmra.mrb[0].mxu0 %v1326
        %v1438 = vpop.f32.mrb[0].mxu0
        %v1439 = vadd.f32 %v1354, %v1438
        %v1440 = vpop.f32.mrb[0].mxu0
        %v1441 = vpop.f32.mrb[0].mxu0
        %v1442 = vadd.f32 %v1354, %v1441
        %v1443 = vpop.f32.mrb[0].mxu0
        %1444 = vmatprep.mubr.bf16.mxu0 0
        %1445 = vmatmul.mubr.bf16.gmra.mrb[0].mxu0 %v1327
        %v1446 = vpop.f32.mrb[0].mxu0
        %v1447 = vadd.f32 %v1354, %v1446
        %v1448 = vpop.f32.mrb[0].mxu0
        %v1449 = vpop.f32.mrb[0].mxu0
        %v1450 = vadd.f32 %v1354, %v1449
        %v1451 = vpop.f32.mrb[0].mxu0
        %1452 = vmatprep.mubr.bf16.mxu0 0
        %1453 = vmatmul.mubr.bf16.gmra.mrb[0].mxu0 %v1328
        %v1454 = vpop.f32.mrb[0].mxu0
        %v1455 = vadd.f32 %v1354, %v1454
        %v1456 = vpop.f32.mrb[0].mxu0
        %v1457 = vpop.f32.mrb[0].mxu0
        %v1458 = vadd.f32 %v1354, %v1457
        %v1459 = vpop.f32.mrb[0].mxu0
        %1460 = vmatprep.mubr.bf16.mxu0 0
        %1461 = vmatmul.mubr.bf16.gmra.mrb[0].mxu0 %v1329
        %v1462 = vpop.f32.mrb[0].mxu0
        %v1463 = vadd.f32 %v1354, %v1462
        %v1464 = vpop.f32.mrb[0].mxu0
        %v1465 = vpop.f32.mrb[0].mxu0
        %v1466 = vadd.f32 %v1354, %v1465
        %v1467 = vpop.f32.mrb[0].mxu0
        %1468 = vmatprep.mubr.bf16.mxu0 0
        %1469 = vmatmul.mubr.bf16.gmra.mrb[0].mxu0 %v1330
        %v1470 = vpop.f32.mrb[0].mxu0
        %v1471 = vadd.f32 %v1354, %v1470
        %v1472 = vpop.f32.mrb[0].mxu0
        %v1473 = vpop.f32.mrb[0].mxu0
        %v1474 = vadd.f32 %v1354, %v1473
        %v1475 = vpop.f32.mrb[0].mxu0
        %1476 = vmatprep.mubr.bf16.mxu0 0
        %1477 = vmatmul.mubr.bf16.gmra.mrb[0].mxu0 %v1331
        %v1478 = vpop.f32.mrb[0].mxu0
        %v1479 = vadd.f32 %v1354, %v1478
        %v1480 = vpop.f32.mrb[0].mxu0
        %v1481 = vpop.f32.mrb[0].mxu0
        %v1482 = vadd.f32 %v1354, %v1481
        %v1483 = vpop.f32.mrb[0].mxu0
        %1484 = vmatprep.mubr.bf16.mxu0 0
        %1485 = vmatmul.mubr.bf16.gmra.mrb[0].mxu0 %v1332
        %v1486 = vpop.f32.mrb[0].mxu0
        %v1487 = vadd.f32 %v1354, %v1486
        %v1488 = vpop.f32.mrb[0].mxu0
        %v1489 = vpop.f32.mrb[0].mxu0
        %v1490 = vpop.f32.mrb[0].mxu0
        %1491 = vdwg.mxu0
        %1492 = vst [vmem:[%s448] sm:$0xff] %v1439
        %1493 = vst [vmem:[%s448 + $0x8] sm:$0xff] %v1442
        %1494 = vst [vmem:[%s448 + $0x10] sm:$0xff] %v1447
        %1495 = vst [vmem:[%s448 + $0x18] sm:$0xff] %v1450
        %1496 = vst [vmem:[%s448 + $0x20] sm:$0xff] %v1455
        %1497 = vst [vmem:[%s448 + $0x28] sm:$0xff] %v1458
        %1498 = vst [vmem:[%s448 + $0x30] sm:$0xff] %v1463
        %1499 = vst [vmem:[%s448 + $0x38] sm:$0xff] %v1466
        %1500 = vst [vmem:[%s448 + $0x40] sm:$0xff] %v1471
        %1501 = vst [vmem:[%s448 + $0x48] sm:$0xff] %v1474
        %1502 = vst [vmem:[%s448 + $0x50] sm:$0xff] %v1479
        %1503 = vst [vmem:[%s448 + $0x58] sm:$0xff] %v1482
        %1504 = vst [vmem:[%s448 + $0x60] sm:$0xff] %v1487
        %s1505 = sand.u32 %s274, 1
        %s1506 = scalar_lea.sflag [#allocation4], %s1505
        %s1507 = sand.u32 %s274, 1
        %s1508 = smul.addr %s1507, 104
        %s1509 = scalar_lea.vmem [#allocation10], %s1508
        // Predicated region
        $region81: #{tpu_custom_call.1} parent=63 // pred_check
          %p1510 = pneg %p284
        $region82: #{tpu_custom_call.1} parent=63 // pred_check_branch
          %1512 = sbr.rel (%p1510) target = $region84
        $region83: #{tpu_custom_call.1} parent=63 // pred_region
          %s1513 = smul.u32 13, %s30
          %s1515 = ssub.s32 1664, 1664
          %1516 = vsyncadd %s1506, %s1515
          %s1517 = smul.addr %s1513, 128
          %s1518 = scalar_lea.hbm %s11, %s1517
          %s1519 = sshll.u32 %s1509, 4
          %s1520 = int_to_ptr.vmem [resolvable:$true] %s1519
          %1525 = dma.vmem_to_hbm [thread:$0]  %s1520, 1664, %s1518, %s1506, 128, 128, 8
        $region84: #{tpu_custom_call.1} parent=63 // pred_fallthru
          _
      $region64: #{tpu_custom_call.1} parent=5 // pred_fallthru
        _
      %p1526 = scmp.le.s32.totalorder 2, %s25
      // Predicated region
      $region85: #{tpu_custom_call.1} parent=5 // pred_check
        %p1527 = pneg %p1526
      $region86: #{tpu_custom_call.1} parent=5 // pred_check_branch
        %1529 = sbr.rel (%p1527) target = $region88
      $region87: #{tpu_custom_call.1} parent=5 // pred_region
        %s1530 = ssub.s32 %s25, 2
        // Predicated region
        $region89: #{tpu_custom_call.1} parent=87 // pred_check
          %p1531 = pneg %p290
        $region90: #{tpu_custom_call.1} parent=87 // pred_check_branch
          %1533 = sbr.rel (%p1531) target = $region92
        $region91: #{tpu_custom_call.1} parent=87 // pred_region
          %s1534 = sand.u32 %s275, 1
          %s1535 = scalar_lea.sflag [#allocation4], %s1534
          %s1536 = sand.u32 %s275, 1
          %s1537 = smul.addr %s1536, 104
          %s1538 = scalar_lea.vmem [#allocation10], %s1537
          %1539 = dma.done %s1535, 1664
        $region92: #{tpu_custom_call.1} parent=87 // pred_fallthru
          _
      $region88: #{tpu_custom_call.1} parent=5 // pred_fallthru
        _
    $region6: #{tpu_custom_call.1} parent=1 // loop_footer
      %s29 = sadd.s32 1, %s25
    $region7: #{tpu_custom_call.1} parent=1 // loop_footer_branch
      %24 = sbr.rel target = $region3
    $region8: #{tpu_custom_call.1} parent=1 // loop_exit
      _
    %1540 = vsyncpa [#allocation3], 1
    %s1541 = scalar_lea.sflag [#allocation3], 1
    %1542 = vsyncpa %s1541, 1
    %1543 = vsyncpa [#allocation6], 1
    %1544 = vsyncpa [#allocation9], 1
    %1545 = vsyncpa [#allocation4], 1
    %s1546 = scalar_lea.sflag [#allocation4], 1
    %1547 = vsyncpa %s1546, 1

</llo_original>
